<compile_context>
chip_gen: v5e
topology: v5e:2x2
jax: 0.10.0
libtpu: 0.0.40
codegen_flags: <defaults>
</compile_context>

<pallas_src>
import functools
import math

import jax
import jax.numpy as jnp
from jax import lax
from jax.experimental import pallas as pl
from jax.experimental.pallas import tpu as pltpu


# ----------------------------------------------------------------------------
# helpers
# ----------------------------------------------------------------------------
def _round_up(x, m):
    return (x + m - 1) // m * m


def _row_tile(M, tile_m):
    """Row tile that is a multiple of 8 and never larger than needed."""
    return min(tile_m, _round_up(M, 8))


# ----------------------------------------------------------------------------
# Pallas kernels
# ----------------------------------------------------------------------------
def _front_kernel(xf_ref, g_ref, wx_ref, wg_ref, b_ref, x0_ref, nv_ref, *,
                  x0_width):
    # [input_emb | g | node_vec1 | node_vec2] = xf @ Wx + g @ Wg + b
    # (g's identity pass-through is folded into Wg, so x0 is produced directly.)
    acc = jnp.dot(xf_ref[...], wx_ref[...], preferred_element_type=jnp.float32)
    acc = acc + jnp.dot(g_ref[...], wg_ref[...],
                        preferred_element_type=jnp.float32)
    acc = acc + b_ref[...]
    x0_ref[...] = acc[:, :x0_width].astype(x0_ref.dtype)
    nv_ref[...] = acc[:, x0_width:].astype(nv_ref.dtype)


def pallas_front(x_feat, g_flat, wx, wg, b, *, x0_width, tile_m=512):
    M, in_feat = x_feat.shape
    g_dim = g_flat.shape[1]
    W = wx.shape[1]
    nv_width = W - x0_width
    TM = _row_tile(M, tile_m)
    kernel = functools.partial(_front_kernel, x0_width=x0_width)
    return pl.pallas_call(
        kernel,
        out_shape=(jax.ShapeDtypeStruct((M, x0_width), jnp.bfloat16),
                   jax.ShapeDtypeStruct((M, nv_width), jnp.bfloat16)),
        grid=(pl.cdiv(M, TM),),
        in_specs=[
            pl.BlockSpec((TM, in_feat), lambda i: (i, 0)),
            pl.BlockSpec((TM, g_dim), lambda i: (i, 0)),
            pl.BlockSpec((in_feat, W), lambda i: (0, 0)),
            pl.BlockSpec((g_dim, W), lambda i: (0, 0)),
            pl.BlockSpec((1, W), lambda i: (0, 0)),
        ],
        out_specs=(pl.BlockSpec((TM, x0_width), lambda i: (i, 0)),
                   pl.BlockSpec((TM, nv_width), lambda i: (i, 0))),
        compiler_params=pltpu.CompilerParams(dimension_semantics=("parallel",)),
    )(x_feat, g_flat, wx, wg, b.reshape(1, W))


def _layer_kernel(x_ref, nv_ref, proj_ref, win_ref, bin_ref, wout_ref,
                  bout_ref, lng_ref, lnb_ref, o_ref, *, tau):
    # Fused per layer: in_fc(+ReLU) -> linear attention over nodes -> out_fc
    # -> +residual (x_ref) -> LayerNorm.  One grid step per batch element.
    x = x_ref[...]                                             # (N, C) bf16

    # in_fc 1x1 conv + ReLU (bf16 MXU, f32 accumulation)
    h = jnp.dot(x, win_ref[...], preferred_element_type=jnp.float32)
    h = jnp.maximum(h + bin_ref[...], 0.0)                     # (N, C) f32
    h_bf = h.astype(jnp.bfloat16)

    d = nv_ref.shape[-1] // 2
    r = proj_ref.shape[-1] // 2
    data_norm = (d ** -0.25) / tau
    ratio = r ** -0.5
    eps = 1e-3

    # q/k random feature maps (f32 statistics; joint projection via
    # block-diagonal proj so one small matmul covers both q and k).
    nvs = nv_ref[...].astype(jnp.float32) * data_norm          # (N, 2d)
    qdkd = jnp.dot(nvs, proj_ref[...],
                   preferred_element_type=jnp.float32)         # (N, 2r)
    qd = qdkd[:, :r]
    kd = qdkd[:, r:]
    sq = nvs * nvs
    diag_q = 0.5 * jnp.sum(sq[:, :d], axis=-1, keepdims=True)
    diag_k = 0.5 * jnp.sum(sq[:, d:], axis=-1, keepdims=True)
    q_prime = ratio * (jnp.exp(qd - diag_q
                               - jnp.max(qd, axis=-1, keepdims=True)) + eps)
    k_prime = ratio * (jnp.exp(kd - diag_k - jnp.max(kd)) + eps)

    # Linearized attention: kv = k'^T h ; num = q' kv ; den = q' (sum_n k').
    kp_bf = k_prime.astype(jnp.bfloat16)
    qp_bf = q_prime.astype(jnp.bfloat16)
    kv = lax.dot_general(kp_bf, h_bf, (((0,), (0,)), ((), ())),
                         preferred_element_type=jnp.float32)    # (r, C)
    num = jnp.dot(qp_bf, kv.astype(jnp.bfloat16),
                  preferred_element_type=jnp.float32)           # (N, C)
    k_sum = jnp.sum(k_prime, axis=0, keepdims=True)             # (1, r)
    den = jnp.sum(q_prime * k_sum, axis=-1, keepdims=True)      # (N, 1)
    attn = num / den                                            # exact divide

    # out_fc + residual + LayerNorm (f32 statistics).
    y = jnp.dot(attn.astype(jnp.bfloat16), wout_ref[...],
                preferred_element_type=jnp.float32)
    y = y + bout_ref[...] + x.astype(jnp.float32)
    mu = jnp.mean(y, axis=-1, keepdims=True)
    yc = y - mu
    var = jnp.mean(yc * yc, axis=-1, keepdims=True)
    out = yc * lax.rsqrt(var + 1e-5) * lng_ref[...] + lnb_ref[...]
    o_ref[...] = out.astype(o_ref.dtype)


def pallas_layer(x, nv, proj2, w_in, b_in, w_out, b_out, ln_g, ln_b, *,
                 tau, vmem_limit_bytes=None):
    """One fused BigST layer (in_fc + attention + out_fc + residual + LN)."""
    B, N, C = x.shape
    d2 = nv.shape[-1]
    r2 = proj2.shape[-1]
    kernel = functools.partial(_layer_kernel, tau=tau)
    cp = dict(dimension_semantics=("parallel",))
    if vmem_limit_bytes is not None:
        cp["vmem_limit_bytes"] = vmem_limit_bytes
    return pl.pallas_call(
        kernel,
        out_shape=jax.ShapeDtypeStruct((B, N, C), jnp.bfloat16),
        grid=(B,),
        in_specs=[
            pl.BlockSpec((None, N, C), lambda b: (b, 0, 0)),
            pl.BlockSpec((None, N, d2), lambda b: (b, 0, 0)),
            pl.BlockSpec((d2, r2), lambda b: (0, 0)),
            pl.BlockSpec((C, C), lambda b: (0, 0)),
            pl.BlockSpec((1, C), lambda b: (0, 0)),
            pl.BlockSpec((C, C), lambda b: (0, 0)),
            pl.BlockSpec((1, C), lambda b: (0, 0)),
            pl.BlockSpec((1, C), lambda b: (0, 0)),
            pl.BlockSpec((1, C), lambda b: (0, 0)),
        ],
        out_specs=pl.BlockSpec((None, N, C), lambda b: (b, 0, 0)),
        compiler_params=pltpu.CompilerParams(**cp),
    )(x, nv, proj2, w_in, b_in.reshape(1, C), w_out, b_out.reshape(1, C),
      ln_g.reshape(1, C), ln_b.reshape(1, C))
    # TODO(synk): for very large node counts N (or B == 1 on v7x), tile N with
    # a second grid axis (kv/k_sum reduction pass, then q'-side output pass
    # with a consistent global max(kd) stabilizer) and/or raise
    # vmem_limit_bytes; for moderate N the per-batch slab fits scoped VMEM.


def _reg_kernel(x0_ref, xl_ref, wa_ref, wb_ref, b_ref, o_ref):
    # ReLU(concat([x0, x_final])) @ W_reg + b, with the concat expressed as
    # two split matmuls so no XLA-side concatenation is needed.
    a = jnp.maximum(x0_ref[...], 0)
    c = jnp.maximum(xl_ref[...], 0)
    y = jnp.dot(a, wa_ref[...], preferred_element_type=jnp.float32)
    y = y + jnp.dot(c, wb_ref[...], preferred_element_type=jnp.float32)
    y = y + b_ref[...]
    o_ref[...] = y.astype(o_ref.dtype)


def pallas_regression(x0, xl, wa, wb, b, *, tile_m=512):
    M, C = x0.shape
    P = wa.shape[1]
    TM = _row_tile(M, tile_m)
    return pl.pallas_call(
        _reg_kernel,
        out_shape=jax.ShapeDtypeStruct((M, P), jnp.bfloat16),
        grid=(pl.cdiv(M, TM),),
        in_specs=[
            pl.BlockSpec((TM, C), lambda i: (i, 0)),
            pl.BlockSpec((TM, C), lambda i: (i, 0)),
            pl.BlockSpec((C, P), lambda i: (0, 0)),
            pl.BlockSpec((C, P), lambda i: (0, 0)),
            pl.BlockSpec((1, P), lambda i: (0, 0)),
        ],
        out_specs=pl.BlockSpec((TM, P), lambda i: (i, 0)),
        compiler_params=pltpu.CompilerParams(dimension_semantics=("parallel",)),
    )(x0, xl, wa, wb, b.reshape(1, P))


# ----------------------------------------------------------------------------
# Parameter construction (deterministic)
# ----------------------------------------------------------------------------
def xavier_uniform(key, shape):
    fan_in, fan_out = shape
    bound = math.sqrt(6.0 / (fan_in + fan_out))
    return jax.random.uniform(key, shape, jnp.float32, -bound, bound)


def conv_params(k, cin, cout):
    k1, k2 = jax.random.split(k)
    bound = 1.0 / math.sqrt(cin)
    w = jax.random.uniform(k1, (cin, cout), jnp.float32, -bound, bound)
    b = jax.random.uniform(k2, (cout,), jnp.float32, -bound, bound)
    return w, b


def init_params(key, *, seq_num, in_dim, out_dim, hid_dim, num_nodes,
                node_emb_dim, time_emb_dim, time_num, week_num,
                random_feature_dim, layer_num):
    keys = iter(jax.random.split(key, 64))
    p = {}
    p["node_emb"] = xavier_uniform(next(keys), (num_nodes, node_emb_dim))
    p["time_emb"] = xavier_uniform(next(keys), (time_num, time_emb_dim))
    p["week_emb"] = xavier_uniform(next(keys), (week_num, time_emb_dim))

    g_dim = node_emb_dim + 2 * time_emb_dim        # 96
    big = hid_dim * 4                              # 128
    in_feat = seq_num * in_dim                     # 36
    assert hid_dim + g_dim == big, "module requires hid_dim + emb dims == 4*hid_dim"

    # Front matmul weights.  Output layout (width big + 2*hid_dim = 192):
    #   [ input_emb(32) | g(96) | node_vec1(32) | node_vec2(32) ]
    # g is passed through via an identity block folded into Wg.
    w_in, b_in = conv_params(next(keys), in_feat, hid_dim)
    w1, b1 = conv_params(next(keys), g_dim, hid_dim)
    w2, b2 = conv_params(next(keys), g_dim, hid_dim)
    tot = big + 2 * hid_dim
    Wx = jnp.zeros((in_feat, tot), jnp.float32).at[:, :hid_dim].set(w_in)
    Wg = jnp.zeros((g_dim, tot), jnp.float32)
    Wg = Wg.at[:, hid_dim:hid_dim + g_dim].set(jnp.eye(g_dim, dtype=jnp.float32))
    Wg = Wg.at[:, big:big + hid_dim].set(w1)
    Wg = Wg.at[:, big + hid_dim:].set(w2)
    b_front = jnp.zeros((tot,), jnp.float32)
    b_front = b_front.at[:hid_dim].set(b_in)
    b_front = b_front.at[big:big + hid_dim].set(b1)
    b_front = b_front.at[big + hid_dim:].set(b2)
    p["front_Wx"] = Wx.astype(jnp.bfloat16)
    p["front_Wg"] = Wg.astype(jnp.bfloat16)
    p["front_b"] = b_front

    for i in range(layer_num):
        wi, bi = conv_params(next(keys), big, big)
        wo, bo = conv_params(next(keys), big, big)
        p[f"in_fc_W_{i}"] = wi.astype(jnp.bfloat16)
        p[f"in_fc_b_{i}"] = bi
        p[f"out_fc_W_{i}"] = wo.astype(jnp.bfloat16)
        p[f"out_fc_b_{i}"] = bo
        p[f"ln_g_{i}"] = jnp.ones((big,), jnp.float32)
        p[f"ln_b_{i}"] = jnp.zeros((big,), jnp.float32)
        # TODO(synk): the official code seeds the random-feature projection from
        # sum(node_vec1) at runtime; here it is a fixed deterministic parameter.
        proj = jax.random.normal(next(keys), (hid_dim, random_feature_dim),
                                 jnp.float32)
        proj2 = jnp.zeros((2 * hid_dim, 2 * random_feature_dim), jnp.float32)
        proj2 = proj2.at[:hid_dim, :random_feature_dim].set(proj)
        proj2 = proj2.at[hid_dim:, random_feature_dim:].set(proj)
        p[f"proj_{i}"] = proj2

    # Regression layer: split weight (x0 part / x_final part), output padded
    # to a lane-dense width of 128.
    out_pad = _round_up(max(out_dim, 128), 128)
    wr, br = conv_params(next(keys), big * 2, out_dim)
    Wa = jnp.zeros((big, out_pad), jnp.float32).at[:, :out_dim].set(wr[:big])
    Wb = jnp.zeros((big, out_pad), jnp.float32).at[:, :out_dim].set(wr[big:])
    b_reg = jnp.zeros((out_pad,), jnp.float32).at[:out_dim].set(br)
    p["reg_Wa"] = Wa.astype(jnp.bfloat16)
    p["reg_Wb"] = Wb.astype(jnp.bfloat16)
    p["reg_b"] = b_reg
    return p


# ----------------------------------------------------------------------------
# BigST forward (glue in JAX, hot path in Pallas)
# ----------------------------------------------------------------------------
def bigst_forward(history_data, params, *, in_dim, hid_dim, out_dim, time_num,
                  tau, layer_num):
    B, T, N, _ = history_data.shape
    x = history_data[..., :in_dim]                  # (B, T, N, in_dim)
    x = x.reshape(B, N, T, in_dim)                  # same flat reinterpretation
                                                    # as torch.reshape

    t_idx = (x[:, :, -1, 1] * time_num).astype(jnp.int32)       # (B, N)
    w_idx = x[:, :, -1, 2].astype(jnp.int32)                     # (B, N)
    time_emb = params["time_emb"][t_idx]            # (B, N, time_emb_dim)
    week_emb = params["week_emb"][w_idx]            # (B, N, time_emb_dim)
    node_emb = jnp.broadcast_to(params["node_emb"][None],
                                (B,) + params["node_emb"].shape)
    g = jnp.concatenate([node_emb, time_emb, week_emb], axis=-1)  # (B,N,96)

    big = hid_dim * 4
    M = B * N
    in_feat = T * in_dim
    x_feat = x.reshape(M, in_feat).astype(jnp.bfloat16)
    g_flat = g.reshape(M, g.shape[-1]).astype(jnp.bfloat16)

    # Fused front matmul: input_emb + g pass-through + W_1 + W_2 in one call;
    # x0 comes out contiguous so no XLA concat is needed.
    x0_flat, nv_flat = pallas_front(x_feat, g_flat, params["front_Wx"],
                                    params["front_Wg"], params["front_b"],
                                    x0_width=big)
    x0 = x0_flat.reshape(B, N, big)                  # [input_emb | g]
    nv = nv_flat.reshape(B, N, 2 * hid_dim)          # [node_vec1 | node_vec2]

    xcur = x0
    for i in range(layer_num):
        # One pallas_call per layer: in_fc(+ReLU) + linear attention + out_fc
        # + residual + LayerNorm; dropout = identity at inference.
        xcur = pallas_layer(xcur, nv, params[f"proj_{i}"],
                            params[f"in_fc_W_{i}"], params[f"in_fc_b_{i}"],
                            params[f"out_fc_W_{i}"], params[f"out_fc_b_{i}"],
                            params[f"ln_g_{i}"], params[f"ln_b_{i}"], tau=tau)

    # ReLU(cat([x0, x_final])) @ W_reg fused into one split-weight kernel.
    out = pallas_regression(x0.reshape(M, big), xcur.reshape(M, big),
                            params["reg_Wa"], params["reg_Wb"], params["reg_b"])
    out = out[:, :out_dim].astype(jnp.float32).reshape(B, N, out_dim)
    # squeeze/permute/transpose/unsqueeze of the PyTorch module -> (B, out, N, 1)
    return jnp.transpose(out, (0, 2, 1))[..., None]
    # TODO(synk): use_long branch (BigSTPreprocess feature extractor loaded from
    # a checkpoint + sample_period concat) is not implemented; use_long=False only.


# ----------------------------------------------------------------------------
if __name__ == "__main__":
    # Small config
    B, T, N = 2, 12, 16
    in_dim = 3
    hid_dim = 32
    node_emb_dim = 32
    time_emb_dim = 32          # node_emb_dim + 2*time_emb_dim = 3*hid_dim = 96
    out_dim = 12               # output_len
    tau = 1.0
    random_feature_dim = 16
    time_num = 288             # time_of_day_size
    week_num = 7               # day_of_week_size
    layer_num = 3

    key = jax.random.PRNGKey(0)
    k_in, k_par = jax.random.split(key)
    kv, kt, kw = jax.random.split(k_in, 3)
    vals = jax.random.normal(kv, (B, T, N, 1), jnp.float32)
    tod = jax.random.uniform(kt, (B, T, N, 1), jnp.float32)            # in [0,1)
    dow = jax.random.randint(kw, (B, T, N, 1), 0, week_num).astype(jnp.float32)
    history_data = jnp.concatenate([vals, tod, dow], axis=-1)           # (B,T,N,3)

    params = init_params(k_par, seq_num=T, in_dim=in_dim, out_dim=out_dim,
                         hid_dim=hid_dim, num_nodes=N,
                         node_emb_dim=node_emb_dim, time_emb_dim=time_emb_dim,
                         time_num=time_num, week_num=week_num,
                         random_feature_dim=random_feature_dim,
                         layer_num=layer_num)

    fwd = jax.jit(functools.partial(bigst_forward, in_dim=in_dim,
                                    hid_dim=hid_dim, out_dim=out_dim,
                                    time_num=time_num, tau=tau,
                                    layer_num=layer_num))
    out = fwd(history_data, params)
    out = jax.block_until_ready(out)
    assert out.shape == (B, out_dim, N, 1), out.shape
    assert bool(jnp.all(jnp.isfinite(out)))
    print("KERNEL_OK")
</pallas_src>

<mosaic_0001>
module attributes {stable_mosaic.version = 11 : i64} {
  func.func @_reg_kernel(%arg0: i32, %arg1: memref<32x128xbf16, #tpu.memory_space<vmem>>, %arg2: memref<32x128xbf16, #tpu.memory_space<vmem>>, %arg3: memref<128x128xbf16, #tpu.memory_space<vmem>>, %arg4: memref<128x128xbf16, #tpu.memory_space<vmem>>, %arg5: memref<1x128xf32, #tpu.memory_space<vmem>>, %arg6: memref<32x128xbf16, #tpu.memory_space<vmem>>) attributes {dimension_semantics = [#tpu.dimension_semantics<parallel>], iteration_bounds = array<i64: 1>, scalar_prefetch = 0 : i64, scratch_operands = 0 : i64, tpu.core_type = #tpu.core_type<tc>, window_params = [{transform_indices = @transform_0, window_bounds = array<i64: 32, 128>}, {transform_indices = @transform_1, window_bounds = array<i64: 32, 128>}, {pipeline_mode = #tpu.pipeline_mode<synchronous>, transform_indices = @transform_2, window_bounds = array<i64: 128, 128>}, {pipeline_mode = #tpu.pipeline_mode<synchronous>, transform_indices = @transform_3, window_bounds = array<i64: 128, 128>}, {pipeline_mode = #tpu.pipeline_mode<synchronous>, transform_indices = @transform_4, window_bounds = array<i64: 1, 128>}, {transform_indices = @transform_5, window_bounds = array<i64: 32, 128>}]} {
    %c0 = arith.constant 0 : index
    %c0_0 = arith.constant 0 : index
    %0 = vector.load %arg1[%c0, %c0_0] : memref<32x128xbf16, #tpu.memory_space<vmem>>, vector<32x128xbf16>
    %cst = arith.constant 0.000000e+00 : bf16
    %1 = vector.broadcast %cst : bf16 to vector<32x128xbf16>
    %2 = arith.maximumf %0, %1 : vector<32x128xbf16>
    %c0_1 = arith.constant 0 : index
    %c0_2 = arith.constant 0 : index
    %3 = vector.load %arg2[%c0_1, %c0_2] : memref<32x128xbf16, #tpu.memory_space<vmem>>, vector<32x128xbf16>
    %cst_3 = arith.constant 0.000000e+00 : bf16
    %4 = vector.broadcast %cst_3 : bf16 to vector<32x128xbf16>
    %5 = arith.maximumf %3, %4 : vector<32x128xbf16>
    %c0_4 = arith.constant 0 : index
    %c0_5 = arith.constant 0 : index
    %6 = vector.load %arg3[%c0_4, %c0_5] : memref<128x128xbf16, #tpu.memory_space<vmem>>, vector<128x128xbf16>
    %cst_6 = arith.constant dense<0.000000e+00> : vector<32x128xf32>
    %7 = tpu.matmul %2, %6, %cst_6 {dimension_numbers = #tpu.dot_dimension_numbers<[1], [0], [0], [1], [0, 0, 1, 1], [], []>} : vector<32x128xbf16>, vector<128x128xbf16>, vector<32x128xf32> -> vector<32x128xf32>
    %c0_7 = arith.constant 0 : index
    %c0_8 = arith.constant 0 : index
    %8 = vector.load %arg4[%c0_7, %c0_8] : memref<128x128xbf16, #tpu.memory_space<vmem>>, vector<128x128xbf16>
    %cst_9 = arith.constant dense<0.000000e+00> : vector<32x128xf32>
    %9 = tpu.matmul %5, %8, %cst_9 {dimension_numbers = #tpu.dot_dimension_numbers<[1], [0], [0], [1], [0, 0, 1, 1], [], []>} : vector<32x128xbf16>, vector<128x128xbf16>, vector<32x128xf32> -> vector<32x128xf32>
    %10 = arith.addf %7, %9 : vector<32x128xf32>
    %c0_10 = arith.constant 0 : index
    %c0_11 = arith.constant 0 : index
    %11 = vector.load %arg5[%c0_10, %c0_11] : memref<1x128xf32, #tpu.memory_space<vmem>>, vector<1x128xf32>
    %12 = vector.broadcast %11 : vector<1x128xf32> to vector<32x128xf32>
    %13 = arith.addf %10, %12 : vector<32x128xf32>
    %14 = arith.truncf %13 : vector<32x128xf32> to vector<32x128xbf16>
    %c0_12 = arith.constant 0 : index
    %c0_13 = arith.constant 0 : index
    %15 = vector.load %arg6[%c0_12, %c0_13] : memref<32x128xbf16, #tpu.memory_space<vmem>>, vector<32x128xbf16>
    tpu.vector_store %arg6[%c0_12, %c0_13], %14 {strides = array<i32>} : memref<32x128xbf16, #tpu.memory_space<vmem>>, vector<32x128xbf16>,
    return
  }
  func.func @transform_0(%arg0: i32) -> (i32, i32) {
    %c0_i32 = arith.constant 0 : i32
    %c0_i32_0 = arith.constant 0 : i32
    return %arg0, %c0_i32 : i32, i32
  }
  func.func @transform_1(%arg0: i32) -> (i32, i32) {
    %c0_i32 = arith.constant 0 : i32
    %c0_i32_0 = arith.constant 0 : i32
    return %arg0, %c0_i32 : i32, i32
  }
  func.func @transform_2(%arg0: i32) -> (i32, i32) {
    %c0_i32 = arith.constant 0 : i32
    %c0_i32_0 = arith.constant 0 : i32
    %c0_i32_1 = arith.constant 0 : i32
    return %c0_i32, %c0_i32_0 : i32, i32
  }
  func.func @transform_3(%arg0: i32) -> (i32, i32) {
    %c0_i32 = arith.constant 0 : i32
    %c0_i32_0 = arith.constant 0 : i32
    %c0_i32_1 = arith.constant 0 : i32
    return %c0_i32, %c0_i32_0 : i32, i32
  }
  func.func @transform_4(%arg0: i32) -> (i32, i32) {
    %c0_i32 = arith.constant 0 : i32
    %c0_i32_0 = arith.constant 0 : i32
    %c0_i32_1 = arith.constant 0 : i32
    return %c0_i32, %c0_i32_0 : i32, i32
  }
  func.func @transform_5(%arg0: i32) -> (i32, i32) {
    %c0_i32 = arith.constant 0 : i32
    %c0_i32_0 = arith.constant 0 : i32
    return %arg0, %c0_i32 : i32, i32
  }
}

module attributes {stable_mosaic.version = 11 : i64} {
  func.func @_front_kernel(%arg0: i32, %arg1: memref<32x36xbf16, #tpu.memory_space<vmem>>, %arg2: memref<32x96xbf16, #tpu.memory_space<vmem>>, %arg3: memref<36x192xbf16, #tpu.memory_space<vmem>>, %arg4: memref<96x192xbf16, #tpu.memory_space<vmem>>, %arg5: memref<1x192xf32, #tpu.memory_space<vmem>>, %arg6: memref<32x128xbf16, #tpu.memory_space<vmem>>, %arg7: memref<32x64xbf16, #tpu.memory_space<vmem>>) attributes {dimension_semantics = [#tpu.dimension_semantics<parallel>], iteration_bounds = array<i64: 1>, scalar_prefetch = 0 : i64, scratch_operands = 0 : i64, tpu.core_type = #tpu.core_type<tc>, window_params = [{transform_indices = @transform_0, window_bounds = array<i64: 32, 36>}, {transform_indices = @transform_1, window_bounds = array<i64: 32, 96>}, {pipeline_mode = #tpu.pipeline_mode<synchronous>, transform_indices = @transform_2, window_bounds = array<i64: 36, 192>}, {pipeline_mode = #tpu.pipeline_mode<synchronous>, transform_indices = @transform_3, window_bounds = array<i64: 96, 192>}, {pipeline_mode = #tpu.pipeline_mode<synchronous>, transform_indices = @transform_4, window_bounds = array<i64: 1, 192>}, {transform_indices = @transform_5, window_bounds = array<i64: 32, 128>}, {transform_indices = @transform_6, window_bounds = array<i64: 32, 64>}]} {
    %c0 = arith.constant 0 : index
    %c0_0 = arith.constant 0 : index
    %0 = vector.load %arg1[%c0, %c0_0] : memref<32x36xbf16, #tpu.memory_space<vmem>>, vector<32x36xbf16>
    %c0_1 = arith.constant 0 : index
    %c0_2 = arith.constant 0 : index
    %1 = vector.load %arg3[%c0_1, %c0_2] : memref<36x192xbf16, #tpu.memory_space<vmem>>, vector<36x192xbf16>
    %cst = arith.constant dense<0.000000e+00> : vector<32x192xf32>
    %2 = tpu.matmul %0, %1, %cst {dimension_numbers = #tpu.dot_dimension_numbers<[1], [0], [0], [1], [0, 0, 1, 1], [], []>} : vector<32x36xbf16>, vector<36x192xbf16>, vector<32x192xf32> -> vector<32x192xf32>
    %c0_3 = arith.constant 0 : index
    %c0_4 = arith.constant 0 : index
    %3 = vector.load %arg2[%c0_3, %c0_4] : memref<32x96xbf16, #tpu.memory_space<vmem>>, vector<32x96xbf16>
    %c0_5 = arith.constant 0 : index
    %c0_6 = arith.constant 0 : index
    %4 = vector.load %arg4[%c0_5, %c0_6] : memref<96x192xbf16, #tpu.memory_space<vmem>>, vector<96x192xbf16>
    %cst_7 = arith.constant dense<0.000000e+00> : vector<32x192xf32>
    %5 = tpu.matmul %3, %4, %cst_7 {dimension_numbers = #tpu.dot_dimension_numbers<[1], [0], [0], [1], [0, 0, 1, 1], [], []>} : vector<32x96xbf16>, vector<96x192xbf16>, vector<32x192xf32> -> vector<32x192xf32>
    %6 = arith.addf %2, %5 : vector<32x192xf32>
    %c0_8 = arith.constant 0 : index
    %c0_9 = arith.constant 0 : index
    %7 = vector.load %arg5[%c0_8, %c0_9] : memref<1x192xf32, #tpu.memory_space<vmem>>, vector<1x192xf32>
    %8 = vector.broadcast %7 : vector<1x192xf32> to vector<32x192xf32>
    %9 = arith.addf %6, %8 : vector<32x192xf32>
    %10 = vector.extract_strided_slice %9 {offsets = [0, 0], sizes = [32, 128], strides = [1, 1]} : vector<32x192xf32> to vector<32x128xf32>
    %11 = arith.truncf %10 : vector<32x128xf32> to vector<32x128xbf16>
    %c0_10 = arith.constant 0 : index
    %c0_11 = arith.constant 0 : index
    %12 = vector.load %arg6[%c0_10, %c0_11] : memref<32x128xbf16, #tpu.memory_space<vmem>>, vector<32x128xbf16>
    tpu.vector_store %arg6[%c0_10, %c0_11], %11 {strides = array<i32>} : memref<32x128xbf16, #tpu.memory_space<vmem>>, vector<32x128xbf16>,
    %13 = vector.extract_strided_slice %9 {offsets = [0, 128], sizes = [32, 64], strides = [1, 1]} : vector<32x192xf32> to vector<32x64xf32>
    %14 = arith.truncf %13 : vector<32x64xf32> to vector<32x64xbf16>
    %c0_12 = arith.constant 0 : index
    %c0_13 = arith.constant 0 : index
    %15 = vector.load %arg7[%c0_12, %c0_13] : memref<32x64xbf16, #tpu.memory_space<vmem>>, vector<32x64xbf16>
    tpu.vector_store %arg7[%c0_12, %c0_13], %14 {strides = array<i32>} : memref<32x64xbf16, #tpu.memory_space<vmem>>, vector<32x64xbf16>,
    return
  }
  func.func @transform_0(%arg0: i32) -> (i32, i32) {
    %c0_i32 = arith.constant 0 : i32
    %c0_i32_0 = arith.constant 0 : i32
    return %arg0, %c0_i32 : i32, i32
  }
  func.func @transform_1(%arg0: i32) -> (i32, i32) {
    %c0_i32 = arith.constant 0 : i32
    %c0_i32_0 = arith.constant 0 : i32
    return %arg0, %c0_i32 : i32, i32
  }
  func.func @transform_2(%arg0: i32) -> (i32, i32) {
    %c0_i32 = arith.constant 0 : i32
    %c0_i32_0 = arith.constant 0 : i32
    %c0_i32_1 = arith.constant 0 : i32
    return %c0_i32, %c0_i32_0 : i32, i32
  }
  func.func @transform_3(%arg0: i32) -> (i32, i32) {
    %c0_i32 = arith.constant 0 : i32
    %c0_i32_0 = arith.constant 0 : i32
    %c0_i32_1 = arith.constant 0 : i32
    return %c0_i32, %c0_i32_0 : i32, i32
  }
  func.func @transform_4(%arg0: i32) -> (i32, i32) {
    %c0_i32 = arith.constant 0 : i32
    %c0_i32_0 = arith.constant 0 : i32
    %c0_i32_1 = arith.constant 0 : i32
    return %c0_i32, %c0_i32_0 : i32, i32
  }
  func.func @transform_5(%arg0: i32) -> (i32, i32) {
    %c0_i32 = arith.constant 0 : i32
    %c0_i32_0 = arith.constant 0 : i32
    return %arg0, %c0_i32 : i32, i32
  }
  func.func @transform_6(%arg0: i32) -> (i32, i32) {
    %c0_i32 = arith.constant 0 : i32
    %c0_i32_0 = arith.constant 0 : i32
    return %arg0, %c0_i32 : i32, i32
  }
}

module attributes {stable_mosaic.version = 11 : i64} {
  func.func @_layer_kernel(%arg0: i32, %arg1: memref<1x16x128xbf16, #tpu.memory_space<vmem>>, %arg2: memref<1x16x64xbf16, #tpu.memory_space<vmem>>, %arg3: memref<64x32xf32, #tpu.memory_space<vmem>>, %arg4: memref<128x128xbf16, #tpu.memory_space<vmem>>, %arg5: memref<1x128xf32, #tpu.memory_space<vmem>>, %arg6: memref<128x128xbf16, #tpu.memory_space<vmem>>, %arg7: memref<1x128xf32, #tpu.memory_space<vmem>>, %arg8: memref<1x128xf32, #tpu.memory_space<vmem>>, %arg9: memref<1x128xf32, #tpu.memory_space<vmem>>, %arg10: memref<1x16x128xbf16, #tpu.memory_space<vmem>>) attributes {dimension_semantics = [#tpu.dimension_semantics<parallel>], iteration_bounds = array<i64: 2>, scalar_prefetch = 0 : i64, scratch_operands = 0 : i64, tpu.core_type = #tpu.core_type<tc>, window_params = [{transform_indices = @transform_0, window_bounds = array<i64: 1, 16, 128>}, {transform_indices = @transform_1, window_bounds = array<i64: 1, 16, 64>}, {pipeline_mode = #tpu.pipeline_mode<synchronous>, transform_indices = @transform_2, window_bounds = array<i64: 64, 32>}, {pipeline_mode = #tpu.pipeline_mode<synchronous>, transform_indices = @transform_3, window_bounds = array<i64: 128, 128>}, {pipeline_mode = #tpu.pipeline_mode<synchronous>, transform_indices = @transform_4, window_bounds = array<i64: 1, 128>}, {pipeline_mode = #tpu.pipeline_mode<synchronous>, transform_indices = @transform_5, window_bounds = array<i64: 128, 128>}, {pipeline_mode = #tpu.pipeline_mode<synchronous>, transform_indices = @transform_6, window_bounds = array<i64: 1, 128>}, {pipeline_mode = #tpu.pipeline_mode<synchronous>, transform_indices = @transform_7, window_bounds = array<i64: 1, 128>}, {pipeline_mode = #tpu.pipeline_mode<synchronous>, transform_indices = @transform_8, window_bounds = array<i64: 1, 128>}, {transform_indices = @transform_9, window_bounds = array<i64: 1, 16, 128>}]} {
    %c0 = arith.constant 0 : index
    %c0_0 = arith.constant 0 : index
    %c0_1 = arith.constant 0 : index
    %0 = vector.load %arg1[%c0, %c0_0, %c0_1] : memref<1x16x128xbf16, #tpu.memory_space<vmem>>, vector<1x16x128xbf16>
    %1 = vector.shape_cast %0 : vector<1x16x128xbf16> to vector<16x128xbf16>
    %c0_2 = arith.constant 0 : index
    %c0_3 = arith.constant 0 : index
    %2 = vector.load %arg4[%c0_2, %c0_3] : memref<128x128xbf16, #tpu.memory_space<vmem>>, vector<128x128xbf16>
    %cst = arith.constant dense<0.000000e+00> : vector<16x128xf32>
    %3 = tpu.matmul %1, %2, %cst {dimension_numbers = #tpu.dot_dimension_numbers<[1], [0], [0], [1], [0, 0, 1, 1], [], []>} : vector<16x128xbf16>, vector<128x128xbf16>, vector<16x128xf32> -> vector<16x128xf32>
    %c0_4 = arith.constant 0 : index
    %c0_5 = arith.constant 0 : index
    %4 = vector.load %arg5[%c0_4, %c0_5] : memref<1x128xf32, #tpu.memory_space<vmem>>, vector<1x128xf32>
    %5 = vector.broadcast %4 : vector<1x128xf32> to vector<16x128xf32>
    %6 = arith.addf %3, %5 : vector<16x128xf32>
    %cst_6 = arith.constant 0.000000e+00 : f32
    %7 = vector.broadcast %cst_6 : f32 to vector<16x128xf32>
    %8 = arith.maximumf %6, %7 : vector<16x128xf32>
    %9 = arith.truncf %8 : vector<16x128xf32> to vector<16x128xbf16>
    %c0_7 = arith.constant 0 : index
    %c0_8 = arith.constant 0 : index
    %c0_9 = arith.constant 0 : index
    %10 = vector.load %arg2[%c0_7, %c0_8, %c0_9] : memref<1x16x64xbf16, #tpu.memory_space<vmem>>, vector<1x16x64xbf16>
    %11 = vector.shape_cast %10 : vector<1x16x64xbf16> to vector<16x64xbf16>
    %12 = arith.extf %11 : vector<16x64xbf16> to vector<16x64xf32>
    %cst_10 = arith.constant 0.420448214 : f32
    %13 = vector.broadcast %cst_10 : f32 to vector<16x64xf32>
    %14 = arith.mulf %12, %13 : vector<16x64xf32>
    %c0_11 = arith.constant 0 : index
    %c0_12 = arith.constant 0 : index
    %15 = vector.load %arg3[%c0_11, %c0_12] : memref<64x32xf32, #tpu.memory_space<vmem>>, vector<64x32xf32>
    %cst_13 = arith.constant dense<0.000000e+00> : vector<16x32xf32>
    %16 = tpu.matmul %14, %15, %cst_13 {dimension_numbers = #tpu.dot_dimension_numbers<[1], [0], [0], [1], [0, 0, 1, 1], [], []>} : vector<16x64xf32>, vector<64x32xf32>, vector<16x32xf32> -> vector<16x32xf32>
    %17 = vector.extract_strided_slice %16 {offsets = [0, 0], sizes = [16, 16], strides = [1, 1]} : vector<16x32xf32> to vector<16x16xf32>
    %18 = vector.extract_strided_slice %16 {offsets = [0, 16], sizes = [16, 16], strides = [1, 1]} : vector<16x32xf32> to vector<16x16xf32>
    %19 = arith.mulf %14, %14 : vector<16x64xf32>
    %20 = vector.extract_strided_slice %19 {offsets = [0, 0], sizes = [16, 32], strides = [1, 1]} : vector<16x64xf32> to vector<16x32xf32>
    %cst_14 = arith.constant dense<0.000000e+00> : vector<16xf32>
    %21 = vector.multi_reduction <add>, %20, %cst_14 [1] : vector<16x32xf32> to vector<16xf32>
    %22 = vector.shape_cast %21 : vector<16xf32> to vector<16x1xf32>
    %cst_15 = arith.constant 5.000000e-01 : f32
    %23 = vector.broadcast %cst_15 : f32 to vector<16x1xf32>
    %24 = arith.mulf %23, %22 : vector<16x1xf32>
    %25 = vector.extract_strided_slice %19 {offsets = [0, 32], sizes = [16, 32], strides = [1, 1]} : vector<16x64xf32> to vector<16x32xf32>
    %cst_16 = arith.constant dense<0.000000e+00> : vector<16xf32>
    %26 = vector.multi_reduction <add>, %25, %cst_16 [1] : vector<16x32xf32> to vector<16xf32>
    %27 = vector.shape_cast %26 : vector<16xf32> to vector<16x1xf32>
    %cst_17 = arith.constant 5.000000e-01 : f32
    %28 = vector.broadcast %cst_17 : f32 to vector<16x1xf32>
    %29 = arith.mulf %28, %27 : vector<16x1xf32>
    %30 = vector.broadcast %24 : vector<16x1xf32> to vector<16x16xf32>
    %31 = arith.subf %17, %30 : vector<16x16xf32>
    %cst_18 = arith.constant dense<0xFF800000> : vector<16xf32>
    %32 = vector.multi_reduction <maximumf>, %17, %cst_18 [1] : vector<16x16xf32> to vector<16xf32>
    %33 = vector.shape_cast %32 : vector<16xf32> to vector<16x1xf32>
    %34 = vector.broadcast %33 : vector<16x1xf32> to vector<16x16xf32>
    %35 = arith.subf %31, %34 : vector<16x16xf32>
    %36 = math.exp %35 : vector<16x16xf32>
    %cst_19 = arith.constant 1.000000e-03 : f32
    %37 = vector.broadcast %cst_19 : f32 to vector<16x16xf32>
    %38 = arith.addf %36, %37 : vector<16x16xf32>
    %cst_20 = arith.constant 2.500000e-01 : f32
    %39 = vector.broadcast %cst_20 : f32 to vector<16x16xf32>
    %40 = arith.mulf %39, %38 : vector<16x16xf32>
    %41 = vector.broadcast %29 : vector<16x1xf32> to vector<16x16xf32>
    %42 = arith.subf %18, %41 : vector<16x16xf32>
    %43 = vector.shape_cast %18 : vector<16x16xf32> to vector<1x16x16xf32>
    %cst_21 = arith.constant dense<0xFF800000> : vector<1xf32>
    %44 = vector.multi_reduction <maximumf>, %43, %cst_21 [1, 2] : vector<1x16x16xf32> to vector<1xf32>
    %45 = vector.shape_cast %44 : vector<1xf32> to vector<1x1x1xf32>
    %46 = vector.extract %45[0, 0, 0] : f32 from vector<1x1x1xf32>
    %47 = vector.broadcast %46 : f32 to vector<16x16xf32>
    %48 = arith.subf %42, %47 : vector<16x16xf32>
    %49 = math.exp %48 : vector<16x16xf32>
    %cst_22 = arith.constant 1.000000e-03 : f32
    %50 = vector.broadcast %cst_22 : f32 to vector<16x16xf32>
    %51 = arith.addf %49, %50 : vector<16x16xf32>
    %cst_23 = arith.constant 2.500000e-01 : f32
    %52 = vector.broadcast %cst_23 : f32 to vector<16x16xf32>
    %53 = arith.mulf %52, %51 : vector<16x16xf32>
    %54 = arith.truncf %53 : vector<16x16xf32> to vector<16x16xbf16>
    %55 = arith.truncf %40 : vector<16x16xf32> to vector<16x16xbf16>
    %cst_24 = arith.constant dense<0.000000e+00> : vector<16x128xf32>
    %56 = tpu.matmul %54, %9, %cst_24 {dimension_numbers = #tpu.dot_dimension_numbers<[0], [0], [1], [1], [0, 1, 1, 1], [], []>} : vector<16x16xbf16>, vector<16x128xbf16>, vector<16x128xf32> -> vector<16x128xf32>
    %57 = arith.truncf %56 : vector<16x128xf32> to vector<16x128xbf16>
    %cst_25 = arith.constant dense<0.000000e+00> : vector<16x128xf32>
    %58 = tpu.matmul %55, %57, %cst_25 {dimension_numbers = #tpu.dot_dimension_numbers<[1], [0], [0], [1], [0, 0, 1, 1], [], []>} : vector<16x16xbf16>, vector<16x128xbf16>, vector<16x128xf32> -> vector<16x128xf32>
    %cst_26 = arith.constant dense<0.000000e+00> : vector<16xf32>
    %59 = vector.multi_reduction <add>, %53, %cst_26 [0] : vector<16x16xf32> to vector<16xf32>
    %60 = vector.shape_cast %59 : vector<16xf32> to vector<1x16xf32>
    %61 = vector.broadcast %60 : vector<1x16xf32> to vector<16x16xf32>
    %62 = arith.mulf %40, %61 : vector<16x16xf32>
    %cst_27 = arith.constant dense<0.000000e+00> : vector<16xf32>
    %63 = vector.multi_reduction <add>, %62, %cst_27 [1] : vector<16x16xf32> to vector<16xf32>
    %64 = vector.shape_cast %63 : vector<16xf32> to vector<16x1xf32>
    %65 = vector.broadcast %64 : vector<16x1xf32> to vector<16x128xf32>
    %66 = arith.divf %58, %65 : vector<16x128xf32>
    %67 = arith.truncf %66 : vector<16x128xf32> to vector<16x128xbf16>
    %c0_28 = arith.constant 0 : index
    %c0_29 = arith.constant 0 : index
    %68 = vector.load %arg6[%c0_28, %c0_29] : memref<128x128xbf16, #tpu.memory_space<vmem>>, vector<128x128xbf16>
    %cst_30 = arith.constant dense<0.000000e+00> : vector<16x128xf32>
    %69 = tpu.matmul %67, %68, %cst_30 {dimension_numbers = #tpu.dot_dimension_numbers<[1], [0], [0], [1], [0, 0, 1, 1], [], []>} : vector<16x128xbf16>, vector<128x128xbf16>, vector<16x128xf32> -> vector<16x128xf32>
    %c0_31 = arith.constant 0 : index
    %c0_32 = arith.constant 0 : index
    %70 = vector.load %arg7[%c0_31, %c0_32] : memref<1x128xf32, #tpu.memory_space<vmem>>, vector<1x128xf32>
    %71 = vector.broadcast %70 : vector<1x128xf32> to vector<16x128xf32>
    %72 = arith.addf %69, %71 : vector<16x128xf32>
    %73 = arith.extf %1 : vector<16x128xbf16> to vector<16x128xf32>
    %74 = arith.addf %72, %73 : vector<16x128xf32>
    %cst_33 = arith.constant dense<0.000000e+00> : vector<16xf32>
    %75 = vector.multi_reduction <add>, %74, %cst_33 [1] : vector<16x128xf32> to vector<16xf32>
    %76 = vector.shape_cast %75 : vector<16xf32> to vector<16x1xf32>
    %cst_34 = arith.constant 1.280000e+02 : f32
    %77 = vector.broadcast %cst_34 : f32 to vector<16x1xf32>
    %78 = arith.divf %76, %77 : vector<16x1xf32>
    %79 = vector.broadcast %78 : vector<16x1xf32> to vector<16x128xf32>
    %80 = arith.subf %74, %79 : vector<16x128xf32>
    %81 = arith.mulf %80, %80 : vector<16x128xf32>
    %cst_35 = arith.constant dense<0.000000e+00> : vector<16xf32>
    %82 = vector.multi_reduction <add>, %81, %cst_35 [1] : vector<16x128xf32> to vector<16xf32>
    %83 = vector.shape_cast %82 : vector<16xf32> to vector<16x1xf32>
    %cst_36 = arith.constant 1.280000e+02 : f32
    %84 = vector.broadcast %cst_36 : f32 to vector<16x1xf32>
    %85 = arith.divf %83, %84 : vector<16x1xf32>
    %cst_37 = arith.constant 9.99999974E-6 : f32
    %86 = vector.broadcast %cst_37 : f32 to vector<16x1xf32>
    %87 = arith.addf %85, %86 : vector<16x1xf32>
    %88 = math.rsqrt %87 : vector<16x1xf32>
    %89 = vector.broadcast %88 : vector<16x1xf32> to vector<16x128xf32>
    %90 = arith.mulf %80, %89 : vector<16x128xf32>
    %c0_38 = arith.constant 0 : index
    %c0_39 = arith.constant 0 : index
    %91 = vector.load %arg8[%c0_38, %c0_39] : memref<1x128xf32, #tpu.memory_space<vmem>>, vector<1x128xf32>
    %92 = vector.broadcast %91 : vector<1x128xf32> to vector<16x128xf32>
    %93 = arith.mulf %90, %92 : vector<16x128xf32>
    %c0_40 = arith.constant 0 : index
    %c0_41 = arith.constant 0 : index
    %94 = vector.load %arg9[%c0_40, %c0_41] : memref<1x128xf32, #tpu.memory_space<vmem>>, vector<1x128xf32>
    %95 = vector.broadcast %94 : vector<1x128xf32> to vector<16x128xf32>
    %96 = arith.addf %93, %95 : vector<16x128xf32>
    %97 = arith.truncf %96 : vector<16x128xf32> to vector<16x128xbf16>
    %c0_42 = arith.constant 0 : index
    %c0_43 = arith.constant 0 : index
    %c0_44 = arith.constant 0 : index
    %98 = vector.load %arg10[%c0_42, %c0_43, %c0_44] : memref<1x16x128xbf16, #tpu.memory_space<vmem>>, vector<1x16x128xbf16>
    %99 = vector.shape_cast %98 : vector<1x16x128xbf16> to vector<16x128xbf16>
    %100 = vector.shape_cast %97 : vector<16x128xbf16> to vector<1x16x128xbf16>
    tpu.vector_store %arg10[%c0_42, %c0_43, %c0_44], %100 {strides = array<i32>} : memref<1x16x128xbf16, #tpu.memory_space<vmem>>, vector<1x16x128xbf16>,
    return
  }
  func.func @transform_0(%arg0: i32) -> (i32, i32, i32) {
    %c0_i32 = arith.constant 0 : i32
    %c0_i32_0 = arith.constant 0 : i32
    %c0_i32_1 = arith.constant 0 : i32
    return %arg0, %c0_i32, %c0_i32_0 : i32, i32, i32
  }
  func.func @transform_1(%arg0: i32) -> (i32, i32, i32) {
    %c0_i32 = arith.constant 0 : i32
    %c0_i32_0 = arith.constant 0 : i32
    %c0_i32_1 = arith.constant 0 : i32
    return %arg0, %c0_i32, %c0_i32_0 : i32, i32, i32
  }
  func.func @transform_2(%arg0: i32) -> (i32, i32) {
    %c0_i32 = arith.constant 0 : i32
    %c0_i32_0 = arith.constant 0 : i32
    %c0_i32_1 = arith.constant 0 : i32
    return %c0_i32, %c0_i32_0 : i32, i32
  }
  func.func @transform_3(%arg0: i32) -> (i32, i32) {
    %c0_i32 = arith.constant 0 : i32
    %c0_i32_0 = arith.constant 0 : i32
    %c0_i32_1 = arith.constant 0 : i32
    return %c0_i32, %c0_i32_0 : i32, i32
  }
  func.func @transform_4(%arg0: i32) -> (i32, i32) {
    %c0_i32 = arith.constant 0 : i32
    %c0_i32_0 = arith.constant 0 : i32
    %c0_i32_1 = arith.constant 0 : i32
    return %c0_i32, %c0_i32_0 : i32, i32
  }
  func.func @transform_5(%arg0: i32) -> (i32, i32) {
    %c0_i32 = arith.constant 0 : i32
    %c0_i32_0 = arith.constant 0 : i32
    %c0_i32_1 = arith.constant 0 : i32
    return %c0_i32, %c0_i32_0 : i32, i32
  }
  func.func @transform_6(%arg0: i32) -> (i32, i32) {
    %c0_i32 = arith.constant 0 : i32
    %c0_i32_0 = arith.constant 0 : i32
    %c0_i32_1 = arith.constant 0 : i32
    return %c0_i32, %c0_i32_0 : i32, i32
  }
  func.func @transform_7(%arg0: i32) -> (i32, i32) {
    %c0_i32 = arith.constant 0 : i32
    %c0_i32_0 = arith.constant 0 : i32
    %c0_i32_1 = arith.constant 0 : i32
    return %c0_i32, %c0_i32_0 : i32, i32
  }
  func.func @transform_8(%arg0: i32) -> (i32, i32) {
    %c0_i32 = arith.constant 0 : i32
    %c0_i32_0 = arith.constant 0 : i32
    %c0_i32_1 = arith.constant 0 : i32
    return %c0_i32, %c0_i32_0 : i32, i32
  }
  func.func @transform_9(%arg0: i32) -> (i32, i32, i32) {
    %c0_i32 = arith.constant 0 : i32
    %c0_i32_0 = arith.constant 0 : i32
    %c0_i32_1 = arith.constant 0 : i32
    return %arg0, %c0_i32, %c0_i32_0 : i32, i32, i32
  }
}

</mosaic_0001>

<llo_original>
// kernel: bigst_forward.5
$region0: #{bigst_forward.5}
  #allocation0 [shape = 'u32[]', space=smem, size = 0x4, offset = 0x4, fixed_abs, tag = 'smem constant byte address 0x4 - core index']
  #allocation1 [shape = 'u32[72,128]{1,0:T(1,128)}', space=vmem, size = 0x9000, scoped, tag = 'internal scratch']
  %s0 = inlined_call_operand.vmem [shape: bf16[32,36], index: 0, kind: input, shape index: {}]
  %s1 = inlined_call_operand.vmem [shape: bf16[32,96], index: 1, kind: input, shape index: {}]
  %s2 = inlined_call_operand.vmem [shape: bf16[36,192], index: 2, kind: input, shape index: {}]
  %s3 = inlined_call_operand.vmem [shape: bf16[96,192], index: 3, kind: input, shape index: {}]
  %s4 = inlined_call_operand.vmem [shape: f32[1,192], index: 4, kind: input, shape index: {}]
  %s5 = inlined_call_operand.vmem [shape: bf16[32,128], index: 5, kind: output, shape index: {0}]
  %s6 = inlined_call_operand.vmem [shape: bf16[32,64], index: 6, kind: output, shape index: {1}]
  %7 = xla_tuple %s5, %s6
  %s8 = sld [smem:[#allocation0]]
  $region38: #{bigst_forward.5} parent=0
    _
  %s10 = ssub.s32 1, %s8
  %s11 = scalar_select 0, %s10, %s8
  // Predicated region
  $region2: #{bigst_forward.5} parent=0 // pred_check
    _
  $region3: #{bigst_forward.5} parent=0 // pred_check_branch
    %13 = sbr.rel (0) target = $region5
  $region4: #{bigst_forward.5} parent=0 // pred_region
    _
  $region5: #{bigst_forward.5} parent=0 // pred_fallthru
    _
  // Predicated region
  $region6: #{bigst_forward.5} parent=0 // pred_check
    _
  $region7: #{bigst_forward.5} parent=0 // pred_check_branch
    %15 = sbr.rel (0) target = $region9
  $region8: #{bigst_forward.5} parent=0 // pred_region
    _
  $region9: #{bigst_forward.5} parent=0 // pred_fallthru
    _
  // Predicated region
  $region10: #{bigst_forward.5} parent=0 // pred_check
    _
  $region11: #{bigst_forward.5} parent=0 // pred_check_branch
    %17 = sbr.rel (0) target = $region13
  $region12: #{bigst_forward.5} parent=0 // pred_region
    _
  $region13: #{bigst_forward.5} parent=0 // pred_fallthru
    _
  // Predicated region
  $region14: #{bigst_forward.5} parent=0 // pred_check
    _
  $region15: #{bigst_forward.5} parent=0 // pred_check_branch
    %19 = sbr.rel (0) target = $region17
  $region16: #{bigst_forward.5} parent=0 // pred_region
    _
  $region17: #{bigst_forward.5} parent=0 // pred_fallthru
    _
  // Predicated region
  $region18: #{bigst_forward.5} parent=0 // pred_check
    _
  $region19: #{bigst_forward.5} parent=0 // pred_check_branch
    %21 = sbr.rel (0) target = $region21
  $region20: #{bigst_forward.5} parent=0 // pred_region
    _
  $region21: #{bigst_forward.5} parent=0 // pred_fallthru
    _
  %v23 = vld [vmem:[%s0] sm:$0xf]
  %v24 = vld [vmem:[%s0 + $0x4] sm:$0xf]
  %v25 = vld [vmem:[%s0 + $0x8] sm:$0xf]
  %v26 = vld [vmem:[%s0 + $0xc] sm:$0xf]
  %v27 = vld [vmem:[%s2] sm:$0xff]
  %v28 = vld [vmem:[%s2 + $0x8] sm:$0xff]
  %v29 = vld [vmem:[%s2 + $0x10] sm:$0xff]
  %v30 = vld [vmem:[%s2 + $0x18] sm:$0xff]
  %v31 = vld [vmem:[%s2 + $0x20] sm:$0x33]
  %v32 = vld [vmem:[%s1] sm:$0xf]
  %v33 = vld [vmem:[%s1 + $0x4] sm:$0xf]
  %v34 = vld [vmem:[%s1 + $0x8] sm:$0xf]
  %v35 = vld [vmem:[%s1 + $0xc] sm:$0xf]
  %v36 = vld [vmem:[%s3] sm:$0xff]
  %v37 = vld [vmem:[%s3 + $0x8] sm:$0xff]
  %v38 = vld [vmem:[%s3 + $0x10] sm:$0xff]
  %v39 = vld [vmem:[%s3 + $0x18] sm:$0xff]
  %v40 = vld [vmem:[%s3 + $0x20] sm:$0xff]
  %v41 = vld [vmem:[%s3 + $0x28] sm:$0xff]
  %v42 = vld [vmem:[%s3 + $0x30] sm:$0xff]
  %v43 = vld [vmem:[%s3 + $0x38] sm:$0xff]
  %v44 = vld [vmem:[%s3 + $0x40] sm:$0xff]
  %v45 = vld [vmem:[%s3 + $0x48] sm:$0xff]
  %v46 = vld [vmem:[%s3 + $0x50] sm:$0xff]
  %v47 = vld [vmem:[%s3 + $0x58] sm:$0xff]
  %v52 = vunpack.c.l.b16 %v32
  %v53 = vunpack.c.l.b16 %v33
  %v54 = vunpack.c.l.b16 %v34
  %v55 = vunpack.c.l.b16 %v35
  %v56 = vpack.c.b16 %v53, %v52
  %v57 = vpack.c.b16 %v55, %v54
  %v70 = vunpack.c.l.b16 %v36
  %v71 = vunpack.c.h.b16 %v36
  %v72 = vunpack.c.l.b16 %v37
  %v73 = vunpack.c.h.b16 %v37
  %v74 = vunpack.c.l.b16 %v38
  %v75 = vunpack.c.h.b16 %v38
  %v76 = vunpack.c.l.b16 %v39
  %v77 = vunpack.c.h.b16 %v39
  %v78 = vunpack.c.l.b16 %v40
  %v79 = vunpack.c.h.b16 %v40
  %v80 = vunpack.c.l.b16 %v41
  %v81 = vunpack.c.h.b16 %v41
  %v82 = vunpack.c.l.b16 %v42
  %v83 = vunpack.c.h.b16 %v42
  %v84 = vunpack.c.l.b16 %v43
  %v85 = vunpack.c.h.b16 %v43
  %v86 = vunpack.c.l.b16 %v44
  %v87 = vunpack.c.h.b16 %v44
  %v88 = vunpack.c.l.b16 %v45
  %v89 = vunpack.c.h.b16 %v45
  %v90 = vunpack.c.l.b16 %v46
  %v91 = vunpack.c.h.b16 %v46
  %v92 = vunpack.c.l.b16 %v47
  %v93 = vunpack.c.h.b16 %v47
  %v94 = vpack.c.b16 %v72, %v70
  %v95 = vpack.c.b16 %v73, %v71
  %v96 = vpack.c.b16 %v76, %v74
  %v97 = vpack.c.b16 %v77, %v75
  %v98 = vpack.c.b16 %v80, %v78
  %v99 = vpack.c.b16 %v81, %v79
  %v100 = vpack.c.b16 %v84, %v82
  %v101 = vpack.c.b16 %v85, %v83
  %v102 = vpack.c.b16 %v88, %v86
  %v103 = vpack.c.b16 %v89, %v87
  %v104 = vpack.c.b16 %v92, %v90
  %v105 = vpack.c.b16 %v93, %v91
  %vm118 = vcmask 785408
  %v120 = vsel %vm118, %v56, 0
  %v123 = vsel %vm118, %v57, 0
  %125 = vmatpush.bf16.msra.mxu0 0
  %126 = vmatpush.bf16.msra.mxu0 0
  %127 = vmatpush.bf16.msra.mxu0 %v104
  %128 = vmatpush.bf16.msra.mxu0 %v102
  %129 = vmatpush.bf16.msra.mxu0 %v100
  %130 = vmatpush.bf16.msra.mxu0 %v98
  %131 = vmatpush.bf16.msra.mxu0 %v96
  %132 = vmatpush.bf16.msra.mxu0 %v94
  %133 = vmatmul.bf16.gmra.mxu0 %v120
  %v134 = vpop.f32.mrf.mxu0
  %v135 = vadd.f32 0.0, %v134
  %v136 = vpop.f32.mrf.mxu0
  %v137 = vadd.f32 0.0, %v136
  %138 = vmatmul.bf16.gmra.mxu0 %v123
  %v139 = vpop.f32.mrf.mxu0
  %v140 = vadd.f32 0.0, %v139
  %v141 = vpop.f32.mrf.mxu0
  %v142 = vadd.f32 0.0, %v141
  %143 = vdwg.mxu0
  %144 = vmatpush.bf16.msra.mxu0 0
  %145 = vmatpush.bf16.msra.mxu0 0
  %146 = vmatpush.bf16.msra.mxu0 %v105
  %147 = vmatpush.bf16.msra.mxu0 %v103
  %148 = vmatpush.bf16.msra.mxu0 %v101
  %149 = vmatpush.bf16.msra.mxu0 %v99
  %150 = vmatpush.bf16.msra.mxu0 %v97
  %151 = vmatpush.bf16.msra.mxu0 %v95
  %152 = vmatmul.bf16.gmra.mxu0 %v120
  %v153 = vpop.f32.mrf.mxu0
  %v154 = vadd.f32 0.0, %v153
  %v155 = vpop.f32.mrf.mxu0
  %v156 = vadd.f32 0.0, %v155
  %157 = vmatmul.bf16.gmra.mxu0 %v123
  %v158 = vpop.f32.mrf.mxu0
  %v159 = vadd.f32 0.0, %v158
  %v160 = vpop.f32.mrf.mxu0
  %v161 = vadd.f32 0.0, %v160
  %162 = vdwg.mxu0
  %v167 = vunpack.c.l.b16 %v23
  %v168 = vunpack.c.l.b16 %v24
  %v169 = vunpack.c.l.b16 %v25
  %v170 = vunpack.c.l.b16 %v26
  %v171 = vpack.c.b16 %v168, %v167
  %v172 = vpack.c.b16 %v170, %v169
  %v178 = vunpack.c.l.b16 %v27
  %v179 = vunpack.c.h.b16 %v27
  %v180 = vunpack.c.l.b16 %v28
  %v181 = vunpack.c.h.b16 %v28
  %v182 = vunpack.c.l.b16 %v29
  %v183 = vunpack.c.h.b16 %v29
  %v184 = vunpack.c.l.b16 %v30
  %v185 = vunpack.c.h.b16 %v30
  %v186 = vunpack.c.l.b16 %v31
  %v187 = vunpack.c.h.b16 %v31
  %v188 = vpack.c.b16 %v180, %v178
  %v189 = vpack.c.b16 %v181, %v179
  %v190 = vpack.c.b16 %v184, %v182
  %v191 = vpack.c.b16 %v185, %v183
  %v192 = vpack.c.b16 %v186, %v186
  %v193 = vpack.c.b16 %v187, %v187
  %vm198 = vcmask 293888
  %v200 = vsel %vm198, %v171, 0
  %v203 = vsel %vm198, %v172, 0
  %vm205 = vcmask 1041408
  %v207 = vsel %vm205, %v192, 0
  %v210 = vsel %vm205, %v193, 0
  %212 = vmatpush.bf16.msra.mxu0 0
  %213 = vmatpush.bf16.msra.mxu0 0
  %214 = vmatpush.bf16.msra.mxu0 0
  %215 = vmatpush.bf16.msra.mxu0 0
  %216 = vmatpush.bf16.msra.mxu0 0
  %217 = vmatpush.bf16.msra.mxu0 %v207
  %218 = vmatpush.bf16.msra.mxu0 %v190
  %219 = vmatpush.bf16.msra.mxu0 %v188
  %220 = vmatmul.bf16.gmra.mxu0 %v200
  %v221 = vpop.f32.mrf.mxu0
  %v222 = vadd.f32 %v135, %v221
  %v223 = vpop.f32.mrf.mxu0
  %v224 = vadd.f32 %v137, %v223
  %225 = vmatmul.bf16.gmra.mxu0 %v203
  %v226 = vpop.f32.mrf.mxu0
  %v227 = vadd.f32 %v140, %v226
  %v228 = vpop.f32.mrf.mxu0
  %v229 = vadd.f32 %v142, %v228
  %230 = vdwg.mxu0
  %231 = vmatpush.bf16.msra.mxu0 0
  %232 = vmatpush.bf16.msra.mxu0 0
  %233 = vmatpush.bf16.msra.mxu0 0
  %234 = vmatpush.bf16.msra.mxu0 0
  %235 = vmatpush.bf16.msra.mxu0 0
  %236 = vmatpush.bf16.msra.mxu0 %v210
  %237 = vmatpush.bf16.msra.mxu0 %v191
  %238 = vmatpush.bf16.msra.mxu0 %v189
  %239 = vmatmul.bf16.gmra.mxu0 %v200
  %v240 = vpop.f32.mrf.mxu0
  %v241 = vadd.f32 %v154, %v240
  %v242 = vpop.f32.mrf.mxu0
  %v243 = vadd.f32 %v156, %v242
  %244 = vmatmul.bf16.gmra.mxu0 %v203
  %v245 = vpop.f32.mrf.mxu0
  %v246 = vadd.f32 %v159, %v245
  %v247 = vpop.f32.mrf.mxu0
  %v248 = vadd.f32 %v161, %v247
  %249 = vdwg.mxu0
  %v250 = vld [vmem:[%s4] sm:$0x3]
  %v252 = vperm.slane %v250, 0
  %v253 = vperm.slane %v250, 1
  %v256 = vadd.f32 %v222, %v252
  %v257 = vadd.f32 %v241, %v253
  %v258 = vadd.f32 %v224, %v252
  %v259 = vadd.f32 %v243, %v253
  %v260 = vadd.f32 %v227, %v252
  %v261 = vadd.f32 %v246, %v253
  %v262 = vadd.f32 %v229, %v252
  %v263 = vadd.f32 %v248, %v253
  %v264 = vpack.c.bf16 %v256, %v256
  %v265 = vpack.c.bf16 %v258, %v258
  %v266 = vpack.c.bf16 %v260, %v260
  %v267 = vpack.c.bf16 %v262, %v262
  %268 = vst [vmem:[%s5] sm:$0xf] %v264
  %269 = vst [vmem:[%s5 + $0x4] sm:$0xf] %v265
  %270 = vst [vmem:[%s5 + $0x8] sm:$0xf] %v266
  %271 = vst [vmem:[%s5 + $0xc] sm:$0xf] %v267
  %v272 = vpack.c.bf16 %v257, %v257
  %v273 = vpack.c.bf16 %v259, %v259
  %v274 = vpack.c.bf16 %v261, %v261
  %v275 = vpack.c.bf16 %v263, %v263
  %vm276 = vcmask 519168
  %277 = vst.msk [vmem:[%s6] sm:$0xf] %vm276, %v272
  %278 = vst.msk [vmem:[%s6 + $0x4] sm:$0xf] %vm276, %v273
  %279 = vst.msk [vmem:[%s6 + $0x8] sm:$0xf] %vm276, %v274
  %280 = vst.msk [vmem:[%s6 + $0xc] sm:$0xf] %vm276, %v275
  // Predicated region
  $region22: #{bigst_forward.5} parent=0 // pred_check
    _
  $region23: #{bigst_forward.5} parent=0 // pred_check_branch
    %282 = sbr.rel (0) target = $region25
  $region24: #{bigst_forward.5} parent=0 // pred_region
    _
  $region25: #{bigst_forward.5} parent=0 // pred_fallthru
    _
  // Predicated region
  $region26: #{bigst_forward.5} parent=0 // pred_check
    _
  $region27: #{bigst_forward.5} parent=0 // pred_check_branch
    %284 = sbr.rel (0) target = $region29
  $region28: #{bigst_forward.5} parent=0 // pred_region
    _
  $region29: #{bigst_forward.5} parent=0 // pred_fallthru
    _
  // Predicated region
  $region30: #{bigst_forward.5} parent=0 // pred_check
    _
  $region31: #{bigst_forward.5} parent=0 // pred_check_branch
    %286 = sbr.rel (0) target = $region33
  $region32: #{bigst_forward.5} parent=0 // pred_region
    _
  $region33: #{bigst_forward.5} parent=0 // pred_fallthru
    _
  // Predicated region
  $region34: #{bigst_forward.5} parent=0 // pred_check
    _
  $region35: #{bigst_forward.5} parent=0 // pred_check_branch
    %288 = sbr.rel (0) target = $region37
  $region36: #{bigst_forward.5} parent=0 // pred_region
    _
  $region37: #{bigst_forward.5} parent=0 // pred_fallthru
    _

// kernel: bigst_forward.9
$region0: #{bigst_forward.9}
  #allocation0 [shape = 'u32[]', space=smem, size = 0x4, offset = 0x4, fixed_abs, tag = 'smem constant byte address 0x4 - core index']
  #allocation1 [shape = 'u32[72,128]{1,0:T(1,128)}', space=vmem, size = 0x9000, scoped, tag = 'internal scratch']
  %s0 = inlined_call_operand.vmem [shape: bf16[32,128], index: 0, kind: input, shape index: {}]
  %s1 = inlined_call_operand.vmem [shape: bf16[32,128], index: 1, kind: input, shape index: {}]
  %s2 = inlined_call_operand.vmem [shape: bf16[128,128], index: 2, kind: input, shape index: {}]
  %s3 = inlined_call_operand.vmem [shape: bf16[128,128], index: 3, kind: input, shape index: {}]
  %s4 = inlined_call_operand.vmem [shape: f32[1,128], index: 4, kind: input, shape index: {}]
  %s5 = inlined_call_operand.vmem [shape: bf16[32,128], index: 5, kind: output, shape index: {}]
  %s6 = sld [smem:[#allocation0]]
  $region30: #{bigst_forward.9} parent=0
    _
  %s8 = ssub.s32 1, %s6
  %s9 = scalar_select 0, %s8, %s6
  // Predicated region
  $region2: #{bigst_forward.9} parent=0 // pred_check
    _
  $region3: #{bigst_forward.9} parent=0 // pred_check_branch
    %11 = sbr.rel (0) target = $region5
  $region4: #{bigst_forward.9} parent=0 // pred_region
    _
  $region5: #{bigst_forward.9} parent=0 // pred_fallthru
    _
  // Predicated region
  $region6: #{bigst_forward.9} parent=0 // pred_check
    _
  $region7: #{bigst_forward.9} parent=0 // pred_check_branch
    %13 = sbr.rel (0) target = $region9
  $region8: #{bigst_forward.9} parent=0 // pred_region
    _
  $region9: #{bigst_forward.9} parent=0 // pred_fallthru
    _
  // Predicated region
  $region10: #{bigst_forward.9} parent=0 // pred_check
    _
  $region11: #{bigst_forward.9} parent=0 // pred_check_branch
    %15 = sbr.rel (0) target = $region13
  $region12: #{bigst_forward.9} parent=0 // pred_region
    _
  $region13: #{bigst_forward.9} parent=0 // pred_fallthru
    _
  // Predicated region
  $region14: #{bigst_forward.9} parent=0 // pred_check
    _
  $region15: #{bigst_forward.9} parent=0 // pred_check_branch
    %17 = sbr.rel (0) target = $region17
  $region16: #{bigst_forward.9} parent=0 // pred_region
    _
  $region17: #{bigst_forward.9} parent=0 // pred_fallthru
    _
  // Predicated region
  $region18: #{bigst_forward.9} parent=0 // pred_check
    _
  $region19: #{bigst_forward.9} parent=0 // pred_check_branch
    %19 = sbr.rel (0) target = $region21
  $region20: #{bigst_forward.9} parent=0 // pred_region
    _
  $region21: #{bigst_forward.9} parent=0 // pred_fallthru
    _
  %v20 = vld [vmem:[%s0] sm:$0xf]
  %v21 = vld [vmem:[%s0 + $0x4] sm:$0xf]
  %v22 = vld [vmem:[%s0 + $0x8] sm:$0xf]
  %v23 = vld [vmem:[%s0 + $0xc] sm:$0xf]
  %v24 = vunpack.c.l.bf16 %v20
  %v25 = vunpack.c.l.bf16 %v21
  %v26 = vunpack.c.l.bf16 %v22
  %v27 = vunpack.c.l.bf16 %v23
  %v28 = vmax.f32 %v24, 0.0
  %v29 = vmax.f32 %v25, 0.0
  %v30 = vmax.f32 %v26, 0.0
  %v31 = vmax.f32 %v27, 0.0
  %v32 = vpack.c.bf16 %v29, %v28
  %v33 = vpack.c.bf16 %v31, %v30
  %v34 = vld [vmem:[%s1] sm:$0xf]
  %v35 = vld [vmem:[%s1 + $0x4] sm:$0xf]
  %v36 = vld [vmem:[%s1 + $0x8] sm:$0xf]
  %v37 = vld [vmem:[%s1 + $0xc] sm:$0xf]
  %v38 = vunpack.c.l.bf16 %v34
  %v39 = vunpack.c.l.bf16 %v35
  %v40 = vunpack.c.l.bf16 %v36
  %v41 = vunpack.c.l.bf16 %v37
  %v42 = vmax.f32 %v38, 0.0
  %v43 = vmax.f32 %v39, 0.0
  %v44 = vmax.f32 %v40, 0.0
  %v45 = vmax.f32 %v41, 0.0
  %v46 = vpack.c.bf16 %v43, %v42
  %v47 = vpack.c.bf16 %v45, %v44
  %v48 = vld [vmem:[%s2] sm:$0xf]
  %v49 = vld [vmem:[%s2 + $0x4] sm:$0xf]
  %v50 = vld [vmem:[%s2 + $0x8] sm:$0xf]
  %v51 = vld [vmem:[%s2 + $0xc] sm:$0xf]
  %v52 = vld [vmem:[%s2 + $0x10] sm:$0xf]
  %v53 = vld [vmem:[%s2 + $0x14] sm:$0xf]
  %v54 = vld [vmem:[%s2 + $0x18] sm:$0xf]
  %v55 = vld [vmem:[%s2 + $0x1c] sm:$0xf]
  %v56 = vld [vmem:[%s2 + $0x20] sm:$0xf]
  %v57 = vld [vmem:[%s2 + $0x24] sm:$0xf]
  %v58 = vld [vmem:[%s2 + $0x28] sm:$0xf]
  %v59 = vld [vmem:[%s2 + $0x2c] sm:$0xf]
  %v60 = vld [vmem:[%s2 + $0x30] sm:$0xf]
  %v61 = vld [vmem:[%s2 + $0x34] sm:$0xf]
  %v62 = vld [vmem:[%s2 + $0x38] sm:$0xf]
  %v63 = vld [vmem:[%s2 + $0x3c] sm:$0xf]
  %v64 = vld [vmem:[%s3] sm:$0xf]
  %v65 = vld [vmem:[%s3 + $0x4] sm:$0xf]
  %v66 = vld [vmem:[%s3 + $0x8] sm:$0xf]
  %v67 = vld [vmem:[%s3 + $0xc] sm:$0xf]
  %v68 = vld [vmem:[%s3 + $0x10] sm:$0xf]
  %v69 = vld [vmem:[%s3 + $0x14] sm:$0xf]
  %v70 = vld [vmem:[%s3 + $0x18] sm:$0xf]
  %v71 = vld [vmem:[%s3 + $0x1c] sm:$0xf]
  %v72 = vld [vmem:[%s3 + $0x20] sm:$0xf]
  %v73 = vld [vmem:[%s3 + $0x24] sm:$0xf]
  %v74 = vld [vmem:[%s3 + $0x28] sm:$0xf]
  %v75 = vld [vmem:[%s3 + $0x2c] sm:$0xf]
  %v76 = vld [vmem:[%s3 + $0x30] sm:$0xf]
  %v77 = vld [vmem:[%s3 + $0x34] sm:$0xf]
  %v78 = vld [vmem:[%s3 + $0x38] sm:$0xf]
  %v79 = vld [vmem:[%s3 + $0x3c] sm:$0xf]
  %v96 = vunpack.c.l.b16 %v64
  %v97 = vunpack.c.l.b16 %v65
  %v98 = vunpack.c.l.b16 %v66
  %v99 = vunpack.c.l.b16 %v67
  %v100 = vunpack.c.l.b16 %v68
  %v101 = vunpack.c.l.b16 %v69
  %v102 = vunpack.c.l.b16 %v70
  %v103 = vunpack.c.l.b16 %v71
  %v104 = vunpack.c.l.b16 %v72
  %v105 = vunpack.c.l.b16 %v73
  %v106 = vunpack.c.l.b16 %v74
  %v107 = vunpack.c.l.b16 %v75
  %v108 = vunpack.c.l.b16 %v76
  %v109 = vunpack.c.l.b16 %v77
  %v110 = vunpack.c.l.b16 %v78
  %v111 = vunpack.c.l.b16 %v79
  %v112 = vpack.c.b16 %v97, %v96
  %v113 = vpack.c.b16 %v99, %v98
  %v114 = vpack.c.b16 %v101, %v100
  %v115 = vpack.c.b16 %v103, %v102
  %v116 = vpack.c.b16 %v105, %v104
  %v117 = vpack.c.b16 %v107, %v106
  %v118 = vpack.c.b16 %v109, %v108
  %v119 = vpack.c.b16 %v111, %v110
  %128 = vmatpush.bf16.msra.mxu0 %v119
  %129 = vmatpush.bf16.msra.mxu0 %v118
  %130 = vmatpush.bf16.msra.mxu0 %v117
  %131 = vmatpush.bf16.msra.mxu0 %v116
  %132 = vmatpush.bf16.msra.mxu0 %v115
  %133 = vmatpush.bf16.msra.mxu0 %v114
  %134 = vmatpush.bf16.msra.mxu0 %v113
  %135 = vmatpush.bf16.msra.mxu0 %v112
  %136 = vmatmul.bf16.gmra.mxu0 %v46
  %v137 = vpop.f32.mrf.mxu0
  %v138 = vadd.f32 0.0, %v137
  %v139 = vpop.f32.mrf.mxu0
  %v140 = vadd.f32 0.0, %v139
  %141 = vmatmul.bf16.gmra.mxu0 %v47
  %v142 = vpop.f32.mrf.mxu0
  %v143 = vadd.f32 0.0, %v142
  %v144 = vpop.f32.mrf.mxu0
  %v145 = vadd.f32 0.0, %v144
  %146 = vdwg.mxu0
  %v163 = vunpack.c.l.b16 %v48
  %v164 = vunpack.c.l.b16 %v49
  %v165 = vunpack.c.l.b16 %v50
  %v166 = vunpack.c.l.b16 %v51
  %v167 = vunpack.c.l.b16 %v52
  %v168 = vunpack.c.l.b16 %v53
  %v169 = vunpack.c.l.b16 %v54
  %v170 = vunpack.c.l.b16 %v55
  %v171 = vunpack.c.l.b16 %v56
  %v172 = vunpack.c.l.b16 %v57
  %v173 = vunpack.c.l.b16 %v58
  %v174 = vunpack.c.l.b16 %v59
  %v175 = vunpack.c.l.b16 %v60
  %v176 = vunpack.c.l.b16 %v61
  %v177 = vunpack.c.l.b16 %v62
  %v178 = vunpack.c.l.b16 %v63
  %v179 = vpack.c.b16 %v164, %v163
  %v180 = vpack.c.b16 %v166, %v165
  %v181 = vpack.c.b16 %v168, %v167
  %v182 = vpack.c.b16 %v170, %v169
  %v183 = vpack.c.b16 %v172, %v171
  %v184 = vpack.c.b16 %v174, %v173
  %v185 = vpack.c.b16 %v176, %v175
  %v186 = vpack.c.b16 %v178, %v177
  %195 = vmatpush.bf16.msra.mxu0 %v186
  %196 = vmatpush.bf16.msra.mxu0 %v185
  %197 = vmatpush.bf16.msra.mxu0 %v184
  %198 = vmatpush.bf16.msra.mxu0 %v183
  %199 = vmatpush.bf16.msra.mxu0 %v182
  %200 = vmatpush.bf16.msra.mxu0 %v181
  %201 = vmatpush.bf16.msra.mxu0 %v180
  %202 = vmatpush.bf16.msra.mxu0 %v179
  %203 = vmatmul.bf16.gmra.mxu0 %v32
  %v204 = vpop.f32.mrf.mxu0
  %v205 = vadd.f32 %v138, %v204
  %v206 = vpop.f32.mrf.mxu0
  %v207 = vadd.f32 %v140, %v206
  %208 = vmatmul.bf16.gmra.mxu0 %v33
  %v209 = vpop.f32.mrf.mxu0
  %v210 = vadd.f32 %v143, %v209
  %v211 = vpop.f32.mrf.mxu0
  %v212 = vadd.f32 %v145, %v211
  %213 = vdwg.mxu0
  %v214 = vld [vmem:[%s4] sm:$0x1]
  %v216 = vperm.slane %v214, 0
  %v218 = vadd.f32 %v205, %v216
  %v219 = vadd.f32 %v207, %v216
  %v220 = vadd.f32 %v210, %v216
  %v221 = vadd.f32 %v212, %v216
  %v222 = vpack.c.bf16 %v218, %v218
  %v223 = vpack.c.bf16 %v219, %v219
  %v224 = vpack.c.bf16 %v220, %v220
  %v225 = vpack.c.bf16 %v221, %v221
  %226 = vst [vmem:[%s5] sm:$0xf] %v222
  %227 = vst [vmem:[%s5 + $0x4] sm:$0xf] %v223
  %228 = vst [vmem:[%s5 + $0x8] sm:$0xf] %v224
  %229 = vst [vmem:[%s5 + $0xc] sm:$0xf] %v225
  // Predicated region
  $region22: #{bigst_forward.9} parent=0 // pred_check
    _
  $region23: #{bigst_forward.9} parent=0 // pred_check_branch
    %231 = sbr.rel (0) target = $region25
  $region24: #{bigst_forward.9} parent=0 // pred_region
    _
  $region25: #{bigst_forward.9} parent=0 // pred_fallthru
    _
  // Predicated region
  $region26: #{bigst_forward.9} parent=0 // pred_check
    _
  $region27: #{bigst_forward.9} parent=0 // pred_check_branch
    %233 = sbr.rel (0) target = $region29
  $region28: #{bigst_forward.9} parent=0 // pred_region
    _
  $region29: #{bigst_forward.9} parent=0 // pred_fallthru
    _

// kernel: bigst_forward.6
$region0: #{bigst_forward.6}
  #allocation0 [shape = 'u32[]', space=smem, size = 0x4, offset = 0x4, fixed_abs, tag = 'smem constant byte address 0x4 - core index']
  #allocation1 [shape = 'u32[72,128]{1,0:T(1,128)}', space=vmem, size = 0x9000, scoped, tag = 'internal scratch']
  %s0 = inlined_call_operand.vmem [shape: bf16[2,16,128], index: 0, kind: input, shape index: {}]
  %s1 = inlined_call_operand.vmem [shape: bf16[2,16,64], index: 1, kind: input, shape index: {}]
  %s2 = inlined_call_operand.vmem [shape: f32[64,32], index: 2, kind: input, shape index: {}]
  %s3 = inlined_call_operand.vmem [shape: bf16[128,128], index: 3, kind: input, shape index: {}]
  %s4 = inlined_call_operand.vmem [shape: f32[1,128], index: 4, kind: input, shape index: {}]
  %s5 = inlined_call_operand.vmem [shape: bf16[128,128], index: 5, kind: input, shape index: {}]
  %s6 = inlined_call_operand.vmem [shape: f32[1,128], index: 6, kind: input, shape index: {}]
  %s7 = inlined_call_operand.vmem [shape: f32[1,128], index: 7, kind: input, shape index: {}]
  %s8 = inlined_call_operand.vmem [shape: f32[1,128], index: 8, kind: input, shape index: {}]
  %s9 = inlined_call_operand.vmem [shape: bf16[2,16,128], index: 9, kind: output, shape index: {}]
  %s10 = sld [smem:[#allocation0]]
  $region69: #{bigst_forward.6} parent=0
    _
  %s12 = ssub.s32 1, %s10
  %s13 = scalar_select 0, %s12, %s10
  loop: start=0, step=1, limit=4
  $region2: #{bigst_forward.6} parent=0 // loop_pre_header
    _
  $region3: #{bigst_forward.6} parent=0 // loop_header
    %s15 = sphi 0, %s19
    %p16 = scmp.ge.s32.totalorder %s15, 4
    %s25 = sphi 0, %s27
    %s28 = sphi 0, %s25
    %s29 = sphi 0, %s28
    %s45 = sphi 0, %s29
    %s51 = sphi 0, %s53
    %s54 = sphi 0, %s51
    %s55 = sphi 0, %s54
    %s71 = sphi 0, %s55
    %s75 = sphi 0, %s75
    %s77 = sphi 0, %s75
    %s78 = sphi 0, %s77
    %s92 = sphi 0, %s78
    %s96 = sphi 0, %s96
    %s98 = sphi 0, %s96
    %s99 = sphi 0, %s98
    %s113 = sphi 0, %s99
    %s117 = sphi 0, %s117
    %s119 = sphi 0, %s117
    %s120 = sphi 0, %s119
    %s134 = sphi 0, %s120
    %s138 = sphi 0, %s138
    %s140 = sphi 0, %s138
    %s141 = sphi 0, %s140
    %s155 = sphi 0, %s141
    %s159 = sphi 0, %s159
    %s161 = sphi 0, %s159
    %s162 = sphi 0, %s161
    %s176 = sphi 0, %s162
    %s180 = sphi 0, %s180
    %s182 = sphi 0, %s180
    %s183 = sphi 0, %s182
    %s197 = sphi 0, %s183
    %s201 = sphi 0, %s201
    %s203 = sphi 0, %s201
    %s204 = sphi 0, %s203
    %s218 = sphi 0, %s204
    %s224 = sphi 0, %s226
    %s227 = sphi 0, %s224
    %s228 = sphi 0, %s227
    %s244 = sphi 0, %s228
  $region4: #{bigst_forward.6} parent=0 // loop_header_branch
    %18 = sbr.rel (%p16) target = $region8
  $region5: #{bigst_forward.6} parent=0 // loop_body
    %s20 = ssub.s32 %s15, 1
    %s21 = ssub.s32 %s15, 2
    %s22 = sadd.s32 %s15, 1
    %s23 = ssub.s32 %s15, %s22
    %p24 = scmp.eq.s32.totalorder %s23, 0
    %s26 = sadd.s32 %s25, 1
    %s27 = scalar_select %p24, %s25, %s26
    %p30 = pneg %p24
    %p31 = scmp.eq.s32.totalorder %s15, 1
    %p32 = por %p30, %p31
    %p33 = scmp.ne.s32.totalorder %s25, %s28
    %p34 = scmp.eq.s32.totalorder %s15, 0
    %p35 = por %p33, %p34
    %p36 = scmp.ne.s32.totalorder %s25, %s28
    %p37 = scmp.eq.s32.totalorder %s20, 1
    %p38 = por %p36, %p37
    %p39 = scmp.ne.s32.totalorder %s28, %s29
    %p40 = scmp.eq.s32.totalorder %s20, 0
    %p41 = por %p39, %p40
    %p42 = scmp.ne.s32.totalorder %s28, %s29
    %p43 = scmp.eq.s32.totalorder %s21, 1
    %p44 = por %p42, %p43
    %p46 = scmp.ne.s32.totalorder %s29, %s45
    %p47 = scmp.eq.s32.totalorder %s21, 0
    %p48 = por %p46, %p47
    %s49 = ssub.s32 %s15, %s22
    %p50 = scmp.eq.s32.totalorder %s49, 0
    %s52 = sadd.s32 %s51, 1
    %s53 = scalar_select %p50, %s51, %s52
    %p56 = pneg %p50
    %p57 = scmp.eq.s32.totalorder %s15, 1
    %p58 = por %p56, %p57
    %p59 = scmp.ne.s32.totalorder %s51, %s54
    %p60 = scmp.eq.s32.totalorder %s15, 0
    %p61 = por %p59, %p60
    %p62 = scmp.ne.s32.totalorder %s51, %s54
    %p63 = scmp.eq.s32.totalorder %s20, 1
    %p64 = por %p62, %p63
    %p65 = scmp.ne.s32.totalorder %s54, %s55
    %p66 = scmp.eq.s32.totalorder %s20, 0
    %p67 = por %p65, %p66
    %p68 = scmp.ne.s32.totalorder %s54, %s55
    %p69 = scmp.eq.s32.totalorder %s21, 1
    %p70 = por %p68, %p69
    %p72 = scmp.ne.s32.totalorder %s55, %s71
    %p73 = scmp.eq.s32.totalorder %s21, 0
    %p74 = por %p72, %p73
    %s76 = sadd.s32 %s75, 1
    %p79 = scmp.eq.s32.totalorder %s15, 1
    %p80 = scmp.ne.s32.totalorder %s75, %s77
    %p81 = scmp.eq.s32.totalorder %s15, 0
    %p82 = por %p80, %p81
    %p83 = scmp.ne.s32.totalorder %s75, %s77
    %p84 = scmp.eq.s32.totalorder %s20, 1
    %p85 = por %p83, %p84
    %p86 = scmp.ne.s32.totalorder %s77, %s78
    %p87 = scmp.eq.s32.totalorder %s20, 0
    %p88 = por %p86, %p87
    %p89 = scmp.ne.s32.totalorder %s77, %s78
    %p90 = scmp.eq.s32.totalorder %s21, 1
    %p91 = por %p89, %p90
    %p93 = scmp.ne.s32.totalorder %s78, %s92
    %p94 = scmp.eq.s32.totalorder %s21, 0
    %p95 = por %p93, %p94
    %s97 = sadd.s32 %s96, 1
    %p100 = scmp.eq.s32.totalorder %s15, 1
    %p101 = scmp.ne.s32.totalorder %s96, %s98
    %p102 = scmp.eq.s32.totalorder %s15, 0
    %p103 = por %p101, %p102
    %p104 = scmp.ne.s32.totalorder %s96, %s98
    %p105 = scmp.eq.s32.totalorder %s20, 1
    %p106 = por %p104, %p105
    %p107 = scmp.ne.s32.totalorder %s98, %s99
    %p108 = scmp.eq.s32.totalorder %s20, 0
    %p109 = por %p107, %p108
    %p110 = scmp.ne.s32.totalorder %s98, %s99
    %p111 = scmp.eq.s32.totalorder %s21, 1
    %p112 = por %p110, %p111
    %p114 = scmp.ne.s32.totalorder %s99, %s113
    %p115 = scmp.eq.s32.totalorder %s21, 0
    %p116 = por %p114, %p115
    %s118 = sadd.s32 %s117, 1
    %p121 = scmp.eq.s32.totalorder %s15, 1
    %p122 = scmp.ne.s32.totalorder %s117, %s119
    %p123 = scmp.eq.s32.totalorder %s15, 0
    %p124 = por %p122, %p123
    %p125 = scmp.ne.s32.totalorder %s117, %s119
    %p126 = scmp.eq.s32.totalorder %s20, 1
    %p127 = por %p125, %p126
    %p128 = scmp.ne.s32.totalorder %s119, %s120
    %p129 = scmp.eq.s32.totalorder %s20, 0
    %p130 = por %p128, %p129
    %p131 = scmp.ne.s32.totalorder %s119, %s120
    %p132 = scmp.eq.s32.totalorder %s21, 1
    %p133 = por %p131, %p132
    %p135 = scmp.ne.s32.totalorder %s120, %s134
    %p136 = scmp.eq.s32.totalorder %s21, 0
    %p137 = por %p135, %p136
    %s139 = sadd.s32 %s138, 1
    %p142 = scmp.eq.s32.totalorder %s15, 1
    %p143 = scmp.ne.s32.totalorder %s138, %s140
    %p144 = scmp.eq.s32.totalorder %s15, 0
    %p145 = por %p143, %p144
    %p146 = scmp.ne.s32.totalorder %s138, %s140
    %p147 = scmp.eq.s32.totalorder %s20, 1
    %p148 = por %p146, %p147
    %p149 = scmp.ne.s32.totalorder %s140, %s141
    %p150 = scmp.eq.s32.totalorder %s20, 0
    %p151 = por %p149, %p150
    %p152 = scmp.ne.s32.totalorder %s140, %s141
    %p153 = scmp.eq.s32.totalorder %s21, 1
    %p154 = por %p152, %p153
    %p156 = scmp.ne.s32.totalorder %s141, %s155
    %p157 = scmp.eq.s32.totalorder %s21, 0
    %p158 = por %p156, %p157
    %s160 = sadd.s32 %s159, 1
    %p163 = scmp.eq.s32.totalorder %s15, 1
    %p164 = scmp.ne.s32.totalorder %s159, %s161
    %p165 = scmp.eq.s32.totalorder %s15, 0
    %p166 = por %p164, %p165
    %p167 = scmp.ne.s32.totalorder %s159, %s161
    %p168 = scmp.eq.s32.totalorder %s20, 1
    %p169 = por %p167, %p168
    %p170 = scmp.ne.s32.totalorder %s161, %s162
    %p171 = scmp.eq.s32.totalorder %s20, 0
    %p172 = por %p170, %p171
    %p173 = scmp.ne.s32.totalorder %s161, %s162
    %p174 = scmp.eq.s32.totalorder %s21, 1
    %p175 = por %p173, %p174
    %p177 = scmp.ne.s32.totalorder %s162, %s176
    %p178 = scmp.eq.s32.totalorder %s21, 0
    %p179 = por %p177, %p178
    %s181 = sadd.s32 %s180, 1
    %p184 = scmp.eq.s32.totalorder %s15, 1
    %p185 = scmp.ne.s32.totalorder %s180, %s182
    %p186 = scmp.eq.s32.totalorder %s15, 0
    %p187 = por %p185, %p186
    %p188 = scmp.ne.s32.totalorder %s180, %s182
    %p189 = scmp.eq.s32.totalorder %s20, 1
    %p190 = por %p188, %p189
    %p191 = scmp.ne.s32.totalorder %s182, %s183
    %p192 = scmp.eq.s32.totalorder %s20, 0
    %p193 = por %p191, %p192
    %p194 = scmp.ne.s32.totalorder %s182, %s183
    %p195 = scmp.eq.s32.totalorder %s21, 1
    %p196 = por %p194, %p195
    %p198 = scmp.ne.s32.totalorder %s183, %s197
    %p199 = scmp.eq.s32.totalorder %s21, 0
    %p200 = por %p198, %p199
    %s202 = sadd.s32 %s201, 1
    %p205 = scmp.eq.s32.totalorder %s15, 1
    %p206 = scmp.ne.s32.totalorder %s201, %s203
    %p207 = scmp.eq.s32.totalorder %s15, 0
    %p208 = por %p206, %p207
    %p209 = scmp.ne.s32.totalorder %s201, %s203
    %p210 = scmp.eq.s32.totalorder %s20, 1
    %p211 = por %p209, %p210
    %p212 = scmp.ne.s32.totalorder %s203, %s204
    %p213 = scmp.eq.s32.totalorder %s20, 0
    %p214 = por %p212, %p213
    %p215 = scmp.ne.s32.totalorder %s203, %s204
    %p216 = scmp.eq.s32.totalorder %s21, 1
    %p217 = por %p215, %p216
    %p219 = scmp.ne.s32.totalorder %s204, %s218
    %p220 = scmp.eq.s32.totalorder %s21, 0
    %p221 = por %p219, %p220
    %s222 = ssub.s32 %s15, %s22
    %p223 = scmp.eq.s32.totalorder %s222, 0
    %s225 = sadd.s32 %s224, 1
    %s226 = scalar_select %p223, %s224, %s225
    %p229 = pneg %p223
    %p230 = scmp.eq.s32.totalorder %s15, 1
    %p231 = por %p229, %p230
    %p232 = scmp.ne.s32.totalorder %s224, %s227
    %p233 = scmp.eq.s32.totalorder %s15, 0
    %p234 = por %p232, %p233
    %p235 = scmp.ne.s32.totalorder %s224, %s227
    %p236 = scmp.eq.s32.totalorder %s20, 1
    %p237 = por %p235, %p236
    %p238 = scmp.ne.s32.totalorder %s227, %s228
    %p239 = scmp.eq.s32.totalorder %s20, 0
    %p240 = por %p238, %p239
    %p241 = scmp.ne.s32.totalorder %s227, %s228
    %p242 = scmp.eq.s32.totalorder %s21, 1
    %p243 = por %p241, %p242
    %p245 = scmp.ne.s32.totalorder %s228, %s244
    %p246 = scmp.eq.s32.totalorder %s21, 0
    %p247 = por %p245, %p246
    %p248 = scmp.le.s32.totalorder 1, %s15
    %p249 = scmp.lt.s32.totalorder %s15, 3
    %p250 = pnand %p248, %p249
    %p251 = pneg %p250
    // Predicated region
    $region9: #{bigst_forward.6} parent=5 // pred_check
      _
    $region10: #{bigst_forward.6} parent=5 // pred_check_branch
      %253 = sbr.rel (%p250) target = $region12
    $region11: #{bigst_forward.6} parent=5 // pred_region
      %s254 = ssub.s32 %s15, 1
      // Predicated region
      $region13: #{bigst_forward.6} parent=11 // pred_check
        %p255 = pneg %p88
      $region14: #{bigst_forward.6} parent=11 // pred_check_branch
        %257 = sbr.rel (%p255) target = $region16
      $region15: #{bigst_forward.6} parent=11 // pred_region
        _
      $region16: #{bigst_forward.6} parent=11 // pred_fallthru
        _
      // Predicated region
      $region17: #{bigst_forward.6} parent=11 // pred_check
        %p258 = pneg %p109
      $region18: #{bigst_forward.6} parent=11 // pred_check_branch
        %260 = sbr.rel (%p258) target = $region20
      $region19: #{bigst_forward.6} parent=11 // pred_region
        _
      $region20: #{bigst_forward.6} parent=11 // pred_fallthru
        _
      // Predicated region
      $region21: #{bigst_forward.6} parent=11 // pred_check
        %p261 = pneg %p130
      $region22: #{bigst_forward.6} parent=11 // pred_check_branch
        %263 = sbr.rel (%p261) target = $region24
      $region23: #{bigst_forward.6} parent=11 // pred_region
        _
      $region24: #{bigst_forward.6} parent=11 // pred_fallthru
        _
      // Predicated region
      $region25: #{bigst_forward.6} parent=11 // pred_check
        %p264 = pneg %p151
      $region26: #{bigst_forward.6} parent=11 // pred_check_branch
        %266 = sbr.rel (%p264) target = $region28
      $region27: #{bigst_forward.6} parent=11 // pred_region
        _
      $region28: #{bigst_forward.6} parent=11 // pred_fallthru
        _
      // Predicated region
      $region29: #{bigst_forward.6} parent=11 // pred_check
        %p267 = pneg %p172
      $region30: #{bigst_forward.6} parent=11 // pred_check_branch
        %269 = sbr.rel (%p267) target = $region32
      $region31: #{bigst_forward.6} parent=11 // pred_region
        _
      $region32: #{bigst_forward.6} parent=11 // pred_fallthru
        _
      // Predicated region
      $region33: #{bigst_forward.6} parent=11 // pred_check
        %p270 = pneg %p193
      $region34: #{bigst_forward.6} parent=11 // pred_check_branch
        %272 = sbr.rel (%p270) target = $region36
      $region35: #{bigst_forward.6} parent=11 // pred_region
        _
      $region36: #{bigst_forward.6} parent=11 // pred_fallthru
        _
      // Predicated region
      $region37: #{bigst_forward.6} parent=11 // pred_check
        %p273 = pneg %p214
      $region38: #{bigst_forward.6} parent=11 // pred_check_branch
        %275 = sbr.rel (%p273) target = $region40
      $region39: #{bigst_forward.6} parent=11 // pred_region
        _
      $region40: #{bigst_forward.6} parent=11 // pred_fallthru
        _
    $region12: #{bigst_forward.6} parent=5 // pred_fallthru
      _
    %p276 = scmp.lt.s32.totalorder %s15, 2
    // Predicated region
    $region41: #{bigst_forward.6} parent=5 // pred_check
      %p277 = pneg %p276
    $region42: #{bigst_forward.6} parent=5 // pred_check_branch
      %279 = sbr.rel (%p277) target = $region44
    $region43: #{bigst_forward.6} parent=5 // pred_region
      // Predicated region
      $region45: #{bigst_forward.6} parent=43 // pred_check
        %p280 = pneg %p35
      $region46: #{bigst_forward.6} parent=43 // pred_check_branch
        %282 = sbr.rel (%p280) target = $region48
      $region47: #{bigst_forward.6} parent=43 // pred_region
        %p283 = scmp.lt.s32.totalorder %s15, 1
        %s284 = scalar_select %p283, %s15, 1
        %s285 = smul.addr %s284, 2
        %s286 = smul.addr %s285, 4
        %s287 = scalar_lea.vmem %s0, %s286
      $region48: #{bigst_forward.6} parent=43 // pred_fallthru
        _
      // Predicated region
      $region49: #{bigst_forward.6} parent=43 // pred_check
        %p288 = pneg %p61
      $region50: #{bigst_forward.6} parent=43 // pred_check_branch
        %290 = sbr.rel (%p288) target = $region52
      $region51: #{bigst_forward.6} parent=43 // pred_region
        %p291 = scmp.lt.s32.totalorder %s15, 1
        %s292 = scalar_select %p291, %s15, 1
        %s293 = smul.addr %s292, 2
        %s294 = smul.addr %s293, 4
        %s295 = scalar_lea.vmem %s1, %s294
      $region52: #{bigst_forward.6} parent=43 // pred_fallthru
        _
    $region44: #{bigst_forward.6} parent=5 // pred_fallthru
      _
    %p296 = scmp.le.s32.totalorder 1, %s15
    %p297 = scmp.lt.s32.totalorder %s15, 3
    %p298 = pnand %p296, %p297
    %p299 = pneg %p298
    // Predicated region
    $region53: #{bigst_forward.6} parent=5 // pred_check
      _
    $region54: #{bigst_forward.6} parent=5 // pred_check_branch
      %301 = sbr.rel (%p298) target = $region56
    $region55: #{bigst_forward.6} parent=5 // pred_region
      %s302 = ssub.s32 %s15, 1
      %p303 = scmp.lt.s32.totalorder %s20, 1
      %s304 = scalar_select %p303, %s20, 1
      %s305 = smul.addr %s304, 2
      %s306 = smul.addr %s305, 4
      %s307 = scalar_lea.vmem %s0, %s306
      %p308 = pneg %p41
      %p309 = pneg %p38
      %p310 = scmp.lt.s32.totalorder %s20, 1
      %s311 = scalar_select %p310, %s20, 1
      %s312 = smul.addr %s311, 2
      %s313 = smul.addr %s312, 4
      %s314 = scalar_lea.vmem %s1, %s313
      %p315 = pneg %p67
      %p316 = pneg %p64
      %p317 = pneg %p88
      %p318 = pneg %p85
      %p319 = pneg %p109
      %p320 = pneg %p106
      %p321 = pneg %p130
      %p322 = pneg %p127
      %p323 = pneg %p151
      %p324 = pneg %p148
      %p325 = pneg %p172
      %p326 = pneg %p169
      %p327 = pneg %p193
      %p328 = pneg %p190
      %p329 = pneg %p214
      %p330 = pneg %p211
      %p331 = pneg %p240
      %p332 = pneg %p237
      %p333 = scmp.lt.s32.totalorder %s20, 1
      %s334 = scalar_select %p333, %s20, 1
      %s335 = smul.addr %s334, 2
      %s336 = smul.addr %s335, 4
      %s337 = scalar_lea.vmem %s9, %s336
      %p338 = scmp.lt.s32.totalorder %s20, 1
      %s339 = scalar_select %p338, %s20, 1
      %s340 = smul.addr %s339, 2
      %s341 = smul.addr %s340, 4
      %s342 = scalar_lea.vmem %s0, %s341
      %p343 = scmp.lt.s32.totalorder %s20, 1
      %s344 = scalar_select %p343, %s20, 1
      %s345 = smul.addr %s344, 2
      %s346 = smul.addr %s345, 4
      %s347 = scalar_lea.vmem %s1, %s346
      %p348 = scmp.lt.s32.totalorder %s20, 1
      %s349 = scalar_select %p348, %s20, 1
      %s350 = smul.addr %s349, 2
      %s351 = smul.addr %s350, 4
      %s352 = scalar_lea.vmem %s9, %s351
      %v354 = vld [vmem:[%s342] sm:$0xf]
      %v355 = vld [vmem:[%s342 + $0x4] sm:$0xf]
      %v356 = vld [vmem:[%s3] sm:$0xf]
      %v357 = vld [vmem:[%s3 + $0x4] sm:$0xf]
      %v358 = vld [vmem:[%s3 + $0x8] sm:$0xf]
      %v359 = vld [vmem:[%s3 + $0xc] sm:$0xf]
      %v360 = vld [vmem:[%s3 + $0x10] sm:$0xf]
      %v361 = vld [vmem:[%s3 + $0x14] sm:$0xf]
      %v362 = vld [vmem:[%s3 + $0x18] sm:$0xf]
      %v363 = vld [vmem:[%s3 + $0x1c] sm:$0xf]
      %v364 = vld [vmem:[%s3 + $0x20] sm:$0xf]
      %v365 = vld [vmem:[%s3 + $0x24] sm:$0xf]
      %v366 = vld [vmem:[%s3 + $0x28] sm:$0xf]
      %v367 = vld [vmem:[%s3 + $0x2c] sm:$0xf]
      %v368 = vld [vmem:[%s3 + $0x30] sm:$0xf]
      %v369 = vld [vmem:[%s3 + $0x34] sm:$0xf]
      %v370 = vld [vmem:[%s3 + $0x38] sm:$0xf]
      %v371 = vld [vmem:[%s3 + $0x3c] sm:$0xf]
      %v372 = vld [vmem:[%s4] sm:$0x1]
      %v374 = vperm.slane %v372, 0
      %v378 = vunpack.c.l.b16 %v354
      %v379 = vunpack.c.l.b16 %v355
      %v380 = vpack.c.b16 %v379, %v378
      %v398 = vunpack.c.l.b16 %v356
      %v399 = vunpack.c.l.b16 %v357
      %v400 = vunpack.c.l.b16 %v358
      %v401 = vunpack.c.l.b16 %v359
      %v402 = vunpack.c.l.b16 %v360
      %v403 = vunpack.c.l.b16 %v361
      %v404 = vunpack.c.l.b16 %v362
      %v405 = vunpack.c.l.b16 %v363
      %v406 = vunpack.c.l.b16 %v364
      %v407 = vunpack.c.l.b16 %v365
      %v408 = vunpack.c.l.b16 %v366
      %v409 = vunpack.c.l.b16 %v367
      %v410 = vunpack.c.l.b16 %v368
      %v411 = vunpack.c.l.b16 %v369
      %v412 = vunpack.c.l.b16 %v370
      %v413 = vunpack.c.l.b16 %v371
      %v414 = vpack.c.b16 %v399, %v398
      %v415 = vpack.c.b16 %v401, %v400
      %v416 = vpack.c.b16 %v403, %v402
      %v417 = vpack.c.b16 %v405, %v404
      %v418 = vpack.c.b16 %v407, %v406
      %v419 = vpack.c.b16 %v409, %v408
      %v420 = vpack.c.b16 %v411, %v410
      %v421 = vpack.c.b16 %v413, %v412
      %430 = vmatpush.bf16.msra.mxu0 %v421
      %431 = vmatpush.bf16.msra.mxu0 %v420
      %432 = vmatpush.bf16.msra.mxu0 %v419
      %433 = vmatpush.bf16.msra.mxu0 %v418
      %434 = vmatpush.bf16.msra.mxu0 %v417
      %435 = vmatpush.bf16.msra.mxu0 %v416
      %436 = vmatpush.bf16.msra.mxu0 %v415
      %437 = vmatpush.bf16.msra.mxu0 %v414
      %438 = vmatmul.bf16.gmra.mxu0 %v380
      %v439 = vpop.f32.mrf.mxu0
      %v440 = vadd.f32 %v374, %v439
      %v441 = vpop.f32.mrf.mxu0
      %v442 = vadd.f32 %v374, %v441
      %443 = vdwg.mxu0
      %v444 = vmax.f32 %v440, 0.0
      %v445 = vmax.f32 %v442, 0.0
      %v446 = vpack.c.bf16 %v445, %v444
      %v447 = vld [vmem:[%s347] sm:$0xf]
      %v448 = vld [vmem:[%s347 + $0x4] sm:$0xf]
      %v449 = vunpack.c.l.bf16 %v447
      %v450 = vunpack.c.l.bf16 %v448
      %v451 = vmul.f32 %v449, 0.4204482
      %v452 = vmul.f32 %v450, 0.4204482
      %v453 = vld [vmem:[%s2] sm:$0xff]
      %v454 = vld [vmem:[%s2 + $0x8] sm:$0xff]
      %v455 = vld [vmem:[%s2 + $0x10] sm:$0xff]
      %v456 = vld [vmem:[%s2 + $0x18] sm:$0xff]
      %v457 = vld [vmem:[%s2 + $0x20] sm:$0xff]
      %v458 = vld [vmem:[%s2 + $0x28] sm:$0xff]
      %v459 = vld [vmem:[%s2 + $0x30] sm:$0xff]
      %v460 = vld [vmem:[%s2 + $0x38] sm:$0xff]
      %vm461 = vcmask 523264
      %v463 = vsel %vm461, %v451, 0
      %v466 = vsel %vm461, %v452, 0
      %468 = vmatpush.msra.mxu0 0.0
      %469 = vmatpush.msra.mxu0 0.0
      %470 = vmatpush.msra.mxu0 0.0
      %471 = vmatpush.msra.mxu0 0.0
      %472 = vmatpush.msra.mxu0 0.0
      %473 = vmatpush.msra.mxu0 0.0
      %474 = vmatpush.msra.mxu0 0.0
      %475 = vmatpush.msra.mxu0 0.0
      %476 = vmatpush.msra.mxu0 %v460
      %477 = vmatpush.msra.mxu0 %v459
      %478 = vmatpush.msra.mxu0 %v458
      %479 = vmatpush.msra.mxu0 %v457
      %480 = vmatpush.msra.mxu0 %v456
      %481 = vmatpush.msra.mxu0 %v455
      %482 = vmatpush.msra.mxu0 %v454
      %483 = vmatpush.msra.mxu0 %v453
      %484 = vmatmul.f32.gmra.mxu0 %v463
      %v485 = vpop.f32.mrf.mxu0
      %v486 = vadd.f32 0.0, %v485
      %487 = vmatmul.f32.gmra.mxu0 %v466
      %v488 = vpop.f32.mrf.mxu0
      %v489 = vadd.f32 0.0, %v488
      %490 = vdwg.mxu0
      %v491 = vmul.f32 %v451, %v451
      %v492 = vmul.f32 %v452, %v452
      %vm493 = vcmask 261120
      %v494 = vsel %vm493, %v491, 0.0
      %495 = vadd.xlane.f32.xlu0 %v494
      %v496 = vpop.xlane.xlu0 %495
      %v497 = vsel %vm493, %v492, 0.0
      %498 = vadd.xlane.f32.xlu0 %v497
      %v499 = vpop.xlane.xlu0 %498
      %v500 = vmul.f32 %v496, 0.5
      %v501 = vmul.f32 %v499, 0.5
      %504 = vrot.lane.b32.xlu0 %v491, 96
      %v505 = vpop.permute.xlu0 %504
      %506 = vrot.lane.b32.xlu0 %v492, 96
      %v507 = vpop.permute.xlu0 %506
      %v510 = vsel %vm493, %v505, 0.0
      %511 = vadd.xlane.f32.xlu0 %v510
      %v512 = vpop.xlane.xlu0 %511
      %v513 = vsel %vm493, %v507, 0.0
      %514 = vadd.xlane.f32.xlu0 %v513
      %v515 = vpop.xlane.xlu0 %514
      %v516 = vmul.f32 %v512, 0.5
      %v517 = vmul.f32 %v515, 0.5
      %v518 = vsub.f32 %v486, %v500
      %v519 = vsub.f32 %v489, %v501
      %vm520 = vcmask 130048
      %v521 = vsel %vm520, %v486, -inf
      %522 = vmax.xlane.f32.xlu0 %v521
      %v523 = vpop.xlane.xlu0 %522
      %v524 = vsel %vm520, %v489, -inf
      %525 = vmax.xlane.f32.xlu0 %v524
      %v526 = vpop.xlane.xlu0 %525
      %v527 = vsub.f32 %v518, %v523
      %v528 = vsub.f32 %v519, %v526
      %v529 = vmul.f32 %v527, 1.442695
      %v530 = vpow.pop %v529
      %v531 = vmul.f32 %v528, 1.442695
      %v532 = vpow.pop %v531
      %v533 = vadd.f32 %v530, 0.001
      %v534 = vadd.f32 %v532, 0.001
      %v535 = vmul.f32 %v533, 0.25
      %v536 = vmul.f32 %v534, 0.25
      %v537 = vsub.f32 %v486, %v516
      %v538 = vsub.f32 %v489, %v517
      %vm539 = vcmask 261248
      %v540 = vsel %vm539, %v486, -inf
      %v541 = vsel %vm539, %v489, -inf
      %v542 = vmax.f32 %v540, %v541
      %543 = vmax.xlane.f32.xlu0 %v542
      %v544 = vpop.xlane.xlu0 %543
      %v545 = vrot.slane %v544, 4
      %v546 = vmax.f32 %v544, %v545
      %v547 = vrot.slane %v546, 2
      %v548 = vmax.f32 %v546, %v547
      %v549 = vrot.slane %v548, 1
      %v550 = vmax.f32 %v548, %v549
      %s551 = vtos %v550
      %v552 = vstv %s551
      %v553 = vsub.f32 %v537, %v552
      %v554 = vsub.f32 %v538, %v552
      %v555 = vmul.f32 %v553, 1.442695
      %v556 = vpow.pop %v555
      %v557 = vmul.f32 %v554, 1.442695
      %v558 = vpow.pop %v557
      %v559 = vadd.f32 %v556, 0.001
      %v560 = vadd.f32 %v558, 0.001
      %v561 = vmul.f32 %v559, 0.25
      %v562 = vmul.f32 %v560, 0.25
      %v563 = vpack.c.bf16 %v562, %v561
      %v564 = vpack.c.bf16 %v536, %v535
      %566 = vrot.lane.b32.xlu0 %v563, 112
      %v567 = vpop.permute.xlu0 %566
      %569 = vxpose.xlu0.c.b16.start [1/8] %v567, 128
      %570 = vxpose.xlu0.c.b16.cont [2/8] 0, 128
      %571 = vxpose.xlu0.c.b16.cont [3/8] 0, 128
      %572 = vxpose.xlu0.c.b16.cont [4/8] 0, 128
      %573 = vxpose.xlu0.c.b16.cont [5/8] 0, 128
      %574 = vxpose.xlu0.c.b16.cont [6/8] 0, 128
      %575 = vxpose.xlu0.c.b16.cont [7/8] 0, 128
      %576 = vxpose.xlu0.c.b16.end [8/8] 0, 128
      %v577 = vpop.trf.xlu0
      %v578 = vpop.trf.xlu0
      %v579 = vpop.trf.xlu0
      %v580 = vpop.trf.xlu0
      %v581 = vpop.trf.xlu0
      %v582 = vpop.trf.xlu0
      %v583 = vpop.trf.xlu0
      %v584 = vpop.trf.xlu0
      %v586 = vsel %vm520, %v577, 0
      %588 = vmatpush.bf16.msra.mxu0 0
      %589 = vmatpush.bf16.msra.mxu0 0
      %590 = vmatpush.bf16.msra.mxu0 0
      %591 = vmatpush.bf16.msra.mxu0 0
      %592 = vmatpush.bf16.msra.mxu0 0
      %593 = vmatpush.bf16.msra.mxu0 0
      %594 = vmatpush.bf16.msra.mxu0 0
      %595 = vmatpush.bf16.msra.mxu0 %v446
      %596 = vmatmul.bf16.gmra.mxu0 %v586
      %v597 = vpop.f32.mrf.mxu0
      %v598 = vadd.f32 0.0, %v597
      %v599 = vpop.f32.mrf.mxu0
      %v600 = vadd.f32 0.0, %v599
      %601 = vdwg.mxu0
      %v602 = vpack.c.bf16 %v600, %v598
      %v604 = vsel %vm520, %v564, 0
      %606 = vmatpush.bf16.msra.mxu0 0
      %607 = vmatpush.bf16.msra.mxu0 0
      %608 = vmatpush.bf16.msra.mxu0 0
      %609 = vmatpush.bf16.msra.mxu0 0
      %610 = vmatpush.bf16.msra.mxu0 0
      %611 = vmatpush.bf16.msra.mxu0 0
      %612 = vmatpush.bf16.msra.mxu0 0
      %613 = vmatpush.bf16.msra.mxu0 %v602
      %614 = vmatmul.bf16.gmra.mxu0 %v604
      %v615 = vpop.f32.mrf.mxu0
      %v616 = vadd.f32 0.0, %v615
      %v617 = vpop.f32.mrf.mxu0
      %v618 = vadd.f32 0.0, %v617
      %619 = vdwg.mxu0
      %v620 = vsel %vm539, %v561, 0.0
      %v621 = vsel %vm539, %v562, 0.0
      %v622 = vadd.f32 %v620, %v621
      %v623 = vrot.slane %v622, 4
      %v624 = vadd.f32 %v622, %v623
      %v625 = vrot.slane %v624, 2
      %v626 = vadd.f32 %v624, %v625
      %v627 = vrot.slane %v626, 1
      %v628 = vadd.f32 %v626, %v627
      %630 = vrot.lane.b32.xlu0 %v628, 112
      %v631 = vpop.permute.xlu0 %630
      %v633 = vmul.f32 %v535, %v631
      %v634 = vmul.f32 %v536, %v631
      %v635 = vsel %vm520, %v633, 0.0
      %636 = vadd.xlane.f32.xlu0 %v635
      %v637 = vpop.xlane.xlu0 %636
      %v638 = vsel %vm520, %v634, 0.0
      %639 = vadd.xlane.f32.xlu0 %v638
      %v640 = vpop.xlane.xlu0 %639
      %v641 = vrcp.pop %v637
      %v642 = vmul.f32 %v637, %v641
      %v643 = vsub.f32 1.0, %v642
      %v644 = vmul.f32 %v641, %v643
      %v645 = vadd.f32 %v641, %v644
      %vm646 = vweird.f32 %v637
      %vm647 = vweird.f32 %v641
      %vm648 = vmor %vm646, %vm647
      %v649 = vsel %vm648, %v641, %v645
      %v650 = vand.u32 2147483647, %v637
      %vm651 = vcmp.eq.f32.partialorder %v650, 8.507059e+37
      %v652 = vand.u32 %v637, 2147483648
      %v653 = vor.u32 1.1754944e-38, %v652
      %v654 = vsel %vm651, %v653, %v649
      %v655 = vmul.f32 %v616, %v654
      %v656 = vrcp.pop %v640
      %v657 = vmul.f32 %v640, %v656
      %v658 = vsub.f32 1.0, %v657
      %v659 = vmul.f32 %v656, %v658
      %v660 = vadd.f32 %v656, %v659
      %vm661 = vweird.f32 %v640
      %vm662 = vweird.f32 %v656
      %vm663 = vmor %vm661, %vm662
      %v664 = vsel %vm663, %v656, %v660
      %v665 = vand.u32 2147483647, %v640
      %vm666 = vcmp.eq.f32.partialorder %v665, 8.507059e+37
      %v667 = vand.u32 %v640, 2147483648
      %v668 = vor.u32 1.1754944e-38, %v667
      %v669 = vsel %vm666, %v668, %v664
      %v670 = vmul.f32 %v618, %v669
      %v671 = vpack.c.bf16 %v670, %v655
      %v672 = vld [vmem:[%s5] sm:$0xf]
      %v673 = vld [vmem:[%s5 + $0x4] sm:$0xf]
      %v674 = vld [vmem:[%s5 + $0x8] sm:$0xf]
      %v675 = vld [vmem:[%s5 + $0xc] sm:$0xf]
      %v676 = vld [vmem:[%s5 + $0x10] sm:$0xf]
      %v677 = vld [vmem:[%s5 + $0x14] sm:$0xf]
      %v678 = vld [vmem:[%s5 + $0x18] sm:$0xf]
      %v679 = vld [vmem:[%s5 + $0x1c] sm:$0xf]
      %v680 = vld [vmem:[%s5 + $0x20] sm:$0xf]
      %v681 = vld [vmem:[%s5 + $0x24] sm:$0xf]
      %v682 = vld [vmem:[%s5 + $0x28] sm:$0xf]
      %v683 = vld [vmem:[%s5 + $0x2c] sm:$0xf]
      %v684 = vld [vmem:[%s5 + $0x30] sm:$0xf]
      %v685 = vld [vmem:[%s5 + $0x34] sm:$0xf]
      %v686 = vld [vmem:[%s5 + $0x38] sm:$0xf]
      %v687 = vld [vmem:[%s5 + $0x3c] sm:$0xf]
      %v688 = vld [vmem:[%s6] sm:$0x1]
      %v690 = vperm.slane %v688, 0
      %v708 = vunpack.c.l.b16 %v672
      %v709 = vunpack.c.l.b16 %v673
      %v710 = vunpack.c.l.b16 %v674
      %v711 = vunpack.c.l.b16 %v675
      %v712 = vunpack.c.l.b16 %v676
      %v713 = vunpack.c.l.b16 %v677
      %v714 = vunpack.c.l.b16 %v678
      %v715 = vunpack.c.l.b16 %v679
      %v716 = vunpack.c.l.b16 %v680
      %v717 = vunpack.c.l.b16 %v681
      %v718 = vunpack.c.l.b16 %v682
      %v719 = vunpack.c.l.b16 %v683
      %v720 = vunpack.c.l.b16 %v684
      %v721 = vunpack.c.l.b16 %v685
      %v722 = vunpack.c.l.b16 %v686
      %v723 = vunpack.c.l.b16 %v687
      %v724 = vpack.c.b16 %v709, %v708
      %v725 = vpack.c.b16 %v711, %v710
      %v726 = vpack.c.b16 %v713, %v712
      %v727 = vpack.c.b16 %v715, %v714
      %v728 = vpack.c.b16 %v717, %v716
      %v729 = vpack.c.b16 %v719, %v718
      %v730 = vpack.c.b16 %v721, %v720
      %v731 = vpack.c.b16 %v723, %v722
      %740 = vmatpush.bf16.msra.mxu0 %v731
      %741 = vmatpush.bf16.msra.mxu0 %v730
      %742 = vmatpush.bf16.msra.mxu0 %v729
      %743 = vmatpush.bf16.msra.mxu0 %v728
      %744 = vmatpush.bf16.msra.mxu0 %v727
      %745 = vmatpush.bf16.msra.mxu0 %v726
      %746 = vmatpush.bf16.msra.mxu0 %v725
      %747 = vmatpush.bf16.msra.mxu0 %v724
      %748 = vmatmul.bf16.gmra.mxu0 %v671
      %v749 = vpop.f32.mrf.mxu0
      %v750 = vadd.f32 %v690, %v749
      %v751 = vpop.f32.mrf.mxu0
      %v752 = vadd.f32 %v690, %v751
      %753 = vdwg.mxu0
      %v754 = vunpack.c.l.bf16 %v354
      %v755 = vunpack.c.l.bf16 %v355
      %v756 = vadd.f32 %v750, %v754
      %v757 = vadd.f32 %v752, %v755
      %758 = vadd.xlane.f32.xlu0 %v756
      %v759 = vpop.xlane.xlu0 %758
      %760 = vadd.xlane.f32.xlu0 %v757
      %v761 = vpop.xlane.xlu0 %760
      %v762 = vrcp.pop 128.0
      %v763 = vmul.f32 128.0, %v762
      %v764 = vsub.f32 1.0, %v763
      %v765 = vmul.f32 %v762, %v764
      %v766 = vadd.f32 %v762, %v765
      %vm767 = vweird.f32 %v762
      %v768 = vsel %vm767, %v762, %v766
      %v769 = vmul.f32 %v759, %v768
      %v770 = vmul.f32 %v761, %v768
      %v771 = vsub.f32 %v756, %v769
      %v772 = vsub.f32 %v757, %v770
      %v773 = vmul.f32 %v771, %v771
      %v774 = vmul.f32 %v772, %v772
      %775 = vadd.xlane.f32.xlu0 %v773
      %v776 = vpop.xlane.xlu0 %775
      %777 = vadd.xlane.f32.xlu0 %v774
      %v778 = vpop.xlane.xlu0 %777
      %v779 = vmul.f32 %v776, %v768
      %v780 = vmul.f32 %v778, %v768
      %v781 = vadd.f32 %v779, 1e-05
      %v782 = vadd.f32 %v780, 1e-05
      %v783 = vrsqrt.pop %v781
      %v784 = vmul.f32 %v783, %v781
      %v785 = vmul.f32 %v784, %v783
      %v786 = vmul.f32 0.5, %v785
      %v787 = vsub.f32 1.5, %v786
      %v788 = vmul.f32 %v783, %v787
      %vm789 = vweird.f32 %v781
      %vm790 = vweird.f32 %v783
      %vm791 = vmor %vm789, %vm790
      %v792 = vsel %vm791, %v783, %v788
      %v793 = vrsqrt.pop %v782
      %v794 = vmul.f32 %v793, %v782
      %v795 = vmul.f32 %v794, %v793
      %v796 = vmul.f32 0.5, %v795
      %v797 = vsub.f32 1.5, %v796
      %v798 = vmul.f32 %v793, %v797
      %vm799 = vweird.f32 %v782
      %vm800 = vweird.f32 %v793
      %vm801 = vmor %vm799, %vm800
      %v802 = vsel %vm801, %v793, %v798
      %v803 = vmul.f32 %v771, %v792
      %v804 = vmul.f32 %v772, %v802
      %v805 = vld [vmem:[%s7] sm:$0x1]
      %v807 = vperm.slane %v805, 0
      %v809 = vmul.f32 %v803, %v807
      %v810 = vmul.f32 %v804, %v807
      %v811 = vld [vmem:[%s8] sm:$0x1]
      %v813 = vperm.slane %v811, 0
      %v815 = vadd.f32 %v809, %v813
      %v816 = vadd.f32 %v810, %v813
      %v817 = vpack.c.bf16 %v815, %v815
      %v818 = vpack.c.bf16 %v816, %v816
      %819 = vst [vmem:[%s352] sm:$0xf] %v817
      %820 = vst [vmem:[%s352 + $0x4] sm:$0xf] %v818
      %p821 = scmp.lt.s32.totalorder %s20, 1
      %s822 = scalar_select %p821, %s20, 1
      %s823 = smul.addr %s822, 2
      %s824 = smul.addr %s823, 4
      %s825 = scalar_lea.vmem %s9, %s824
      // Predicated region
      $region57: #{bigst_forward.6} parent=55 // pred_check
        %p826 = pneg %p237
      $region58: #{bigst_forward.6} parent=55 // pred_check_branch
        %828 = sbr.rel (%p826) target = $region60
      $region59: #{bigst_forward.6} parent=55 // pred_region
        _
      $region60: #{bigst_forward.6} parent=55 // pred_fallthru
        _
    $region56: #{bigst_forward.6} parent=5 // pred_fallthru
      _
    %p829 = scmp.le.s32.totalorder 2, %s15
    // Predicated region
    $region61: #{bigst_forward.6} parent=5 // pred_check
      %p830 = pneg %p829
    $region62: #{bigst_forward.6} parent=5 // pred_check_branch
      %832 = sbr.rel (%p830) target = $region64
    $region63: #{bigst_forward.6} parent=5 // pred_region
      %s833 = ssub.s32 %s15, 2
      // Predicated region
      $region65: #{bigst_forward.6} parent=63 // pred_check
        %p834 = pneg %p243
      $region66: #{bigst_forward.6} parent=63 // pred_check_branch
        %836 = sbr.rel (%p834) target = $region68
      $region67: #{bigst_forward.6} parent=63 // pred_region
        %p837 = scmp.lt.s32.totalorder %s21, 1
        %s838 = scalar_select %p837, %s21, 1
        %s839 = smul.addr %s838, 2
        %s840 = smul.addr %s839, 4
        %s841 = scalar_lea.vmem %s9, %s840
      $region68: #{bigst_forward.6} parent=63 // pred_fallthru
        _
    $region64: #{bigst_forward.6} parent=5 // pred_fallthru
      _
  $region6: #{bigst_forward.6} parent=0 // loop_footer
    %s19 = sadd.s32 1, %s15
  $region7: #{bigst_forward.6} parent=0 // loop_footer_branch
    %14 = sbr.rel target = $region3
  $region8: #{bigst_forward.6} parent=0 // loop_exit
    _

</llo_original>
